<compile_context>
chip_gen: v7x
topology: tpu7x:2x2x1
jax: 0.10.0
libtpu: 0.0.40
codegen_flags: <defaults>
</compile_context>

<pallas_src>
import jax
import jax.numpy as jnp
from jax import lax
from jax.experimental import pallas as pl
from jax.experimental.pallas import tpu as pltpu


def _make_resblock_kernel(H, W, C, NB, n_block):
    HW = H * W
    L = NB * HW
    # Lane-roll amount that brings input pixel (y+dy, x+dx) to output pixel (y, x)
    # on the flattened (per-image) HW axis: out[p] needs in[p + dy*W + dx].
    shifts = [(-((ky - 1) * W + (kx - 1))) % L for ky in range(3) for kx in range(3)]

    def kernel(x_ref, w_ref, b_ref, m_ref, a_ref, o_ref):
        # x_ref: (NB, C, HW)         lane-dense channel-major image slabs
        # w_ref: (2*n_block, C, 9*C) im2col-packed conv weights (Cout, 9*Cin)
        # b_ref: (2*n_block, C, 1)   conv biases as column vectors
        # m_ref: (9, L)              per-tap 0/1 boundary masks (f32)
        # a_ref: (n_block, 3)        PReLU slopes (SMEM scalars)
        # o_ref: (NB, C, HW)

        # ---- hoisted per-step constants (outside the unrolled block loop) ----
        x_all = x_ref[...].astype(jnp.float32)                 # (NB, C, HW)
        # Fold the per-step batch into the lane axis -> (C, NB*HW), stays lane-dense
        # (concat at 128-aligned lane offsets, done once per grid step).
        x_cur = jnp.concatenate([x_all[n] for n in range(NB)], axis=-1)
        w_all = w_ref[...]                                      # (2n, C, 9C)
        b_all = b_ref[...]                                      # (2n, C, 1)
        masks = m_ref[...]                                      # (9, L)
        mask_rows = [masks[t:t + 1, :] for t in range(9)]       # 9 x (1, L), sliced once

        def conv3x3(img, idx):
            # im2col patch stack: 9 lane-rolled, boundary-masked copies of `img`
            # stacked along the contraction axis, then ONE MXU dot.
            parts = []
            for t in range(9):
                if t == 4:                       # center tap: no shift, mask all-ones
                    parts.append(img)
                else:
                    sh = shifts[t]
                    rolled = img if sh == 0 else pltpu.roll(img, sh, axis=1)
                    parts.append(rolled * mask_rows[t])
            patches = jnp.concatenate(parts, axis=0)            # (9*C, L)
            return jnp.dot(w_all[idx], patches,
                           preferred_element_type=jnp.float32)  # (C, L)

        def prelu(y, a):
            return jnp.where(y >= 0.0, y, a * y)

        # n_block is small & static -> unrolled; h and the residual stay in VMEM/vregs.
        for blk in range(n_block):
            h = conv3x3(x_cur, 2 * blk) + b_all[2 * blk]
            h = prelu(h, a_ref[blk, 0])
            y = conv3x3(h, 2 * blk + 1) + b_all[2 * blk + 1]
            y = prelu(y, a_ref[blk, 1])
            y = prelu(y, a_ref[blk, 2])
            x_cur = y + x_cur

        # Unfold the lane-folded batch back into per-image slabs (128-aligned slices).
        for n in range(NB):
            o_ref[n] = x_cur[:, n * HW:(n + 1) * HW].astype(o_ref.dtype)

    return kernel


def _num_parallel_cores():
    """Best-effort TensorCore count per device (2 on v7x, else 1)."""
    try:
        kind = jax.devices()[0].device_kind.lower()
    except Exception:
        return 1
    return 2 if ("v7" in kind or "7x" in kind) else 1


def resblock_forward(x_nchw, params):
    """Pallas ResBlock forward. x_nchw: (N, C, H, W) like PyTorch."""
    N, C, H, W = x_nchw.shape
    n_block = len(params)
    HW = H * W

    # One fat grid step per TensorCore (v5e/v6e: 1 step for the whole batch;
    # v7x: 2 'parallel' steps, one per TC).
    G = min(N, _num_parallel_cores())
    while N % G:
        G -= 1
    G = max(G, 1)
    NB = N // G
    L = NB * HW

    # ---- pack parameters once (tiny; constant-folded / fused under jit) ----
    # Conv weight p["w*"] is HWIO (3,3,Cin,Cout); im2col-pack to (Cout, 9*Cin) so the
    # whole 3x3 conv becomes a single dot against a (9*Cin, NB*HW) patch stack.
    w_list, b_list, a_list = [], [], []
    for p in params:
        for wk, bk in (("w1", "b1"), ("w2", "b2")):
            w = p[wk].astype(jnp.float32).reshape(9, C, C)          # (tap, Cin, Cout)
            w_list.append(jnp.transpose(w, (2, 0, 1)).reshape(C, 9 * C))
            b_list.append(p[bk].astype(jnp.float32))
        a_list.append(jnp.concatenate([p["a1"], p["a2"], p["a3"]]))
    w_stack = jnp.stack(w_list, axis=0)                       # (2n, Cout, 9*Cin)
    b_stack = jnp.stack(b_list, axis=0)[:, :, None]           # (2n, C, 1)
    a_stack = jnp.stack(a_list, axis=0).astype(jnp.float32)   # (n_block, 3)

    # ---- per-tap boundary masks on the folded lane axis (computed once) ----
    p_flat = jnp.arange(HW)
    yy, xx = p_flat // W, p_flat % W
    rows = []
    for ky in range(3):
        for kx in range(3):
            dy, dx = ky - 1, kx - 1
            valid = ((yy + dy >= 0) & (yy + dy < H) &
                     (xx + dx >= 0) & (xx + dx < W))
            rows.append(valid.astype(jnp.float32))
    mask = jnp.tile(jnp.stack(rows, axis=0), (1, NB))         # (9, NB*HW)

    # NCHW is already channel-major: (N, C, H*W) is a free, lane-dense reshape.
    x_slab = x_nchw.reshape(N, C, HW)

    out_slab = pl.pallas_call(
        _make_resblock_kernel(H, W, C, NB, n_block),
        out_shape=jax.ShapeDtypeStruct((N, C, HW), x_nchw.dtype),
        grid=(G,),
        in_specs=[
            pl.BlockSpec((NB, C, HW), lambda g: (g, 0, 0)),
            # Invariant operands: constant index_map -> fetched once.
            pl.BlockSpec((n_block * 2, C, 9 * C), lambda g: (0, 0, 0)),
            pl.BlockSpec((n_block * 2, C, 1), lambda g: (0, 0, 0)),
            pl.BlockSpec((9, L), lambda g: (0, 0)),
            pl.BlockSpec(memory_space=pltpu.SMEM),
        ],
        out_specs=pl.BlockSpec((NB, C, HW), lambda g: (g, 0, 0)),
        compiler_params=pltpu.CompilerParams(
            dimension_semantics=("parallel",)),   # shards the fat steps over v7x's TCs
    )(x_slab, w_stack, b_stack, mask, a_stack)

    return out_slab.reshape(N, C, H, W)


def make_params(key, din, n_block):
    params = []
    for _ in range(n_block):
        key, k1, k2, k3, k4 = jax.random.split(key, 5)
        params.append(dict(
            w1=(jax.random.normal(k1, (3, 3, din, din), jnp.float32) * 0.1),
            b1=(jax.random.normal(k2, (din,), jnp.float32) * 0.1),
            a1=jnp.array([0.25], jnp.float32),   # PReLU default init
            w2=(jax.random.normal(k3, (3, 3, din, din), jnp.float32) * 0.1),
            b2=(jax.random.normal(k4, (din,), jnp.float32) * 0.1),
            a2=jnp.array([0.25], jnp.float32),
            a3=jnp.array([0.25], jnp.float32),
        ))
    return params


def _ref_forward(x_nchw, params):
    """Pure-JAX reference mirroring the PyTorch module (NCHW semantics)."""
    x = jnp.transpose(x_nchw, (0, 2, 3, 1))  # NHWC

    def conv(h, w, b):
        out = lax.conv_general_dilated(
            h, w, window_strides=(1, 1), padding="SAME",
            dimension_numbers=("NHWC", "HWIO", "NHWC"))
        return out + b.reshape(1, 1, 1, -1)

    def prelu(h, a):
        return jnp.where(h >= 0, h, a[0] * h)

    for p in params:
        resx = x
        h = prelu(conv(x, p["w1"], p["b1"]), p["a1"])
        h = prelu(conv(h, p["w2"], p["b2"]), p["a2"])
        h = prelu(h, p["a3"])
        x = h + resx
    return jnp.transpose(x, (0, 3, 1, 2))


if __name__ == "__main__":
    N, C, H, W = 2, 4, 16, 16
    n_block = 2

    key = jax.random.PRNGKey(0)
    kx_, kp = jax.random.split(key)
    x = jax.random.normal(kx_, (N, C, H, W), jnp.float32)
    params = make_params(kp, C, n_block)

    fwd = jax.jit(resblock_forward)
    out = jax.block_until_ready(fwd(x, params))

    ref = jax.block_until_ready(_ref_forward(x, params))
    assert out.shape == (N, C, H, W)
    err = jnp.max(jnp.abs(out - ref))
    assert jnp.allclose(out, ref, atol=1e-4, rtol=1e-4), f"max err {err}"

    print("KERNEL_OK")
</pallas_src>

<mosaic_0001>
module attributes {stable_mosaic.version = 11 : i64} {
  func.func @kernel(%arg0: i32, %arg1: memref<2x4x256xf32, #tpu.memory_space<vmem>>, %arg2: memref<4x4x36xf32, #tpu.memory_space<vmem>>, %arg3: memref<4x4x1xf32, #tpu.memory_space<vmem>>, %arg4: memref<9x512xf32, #tpu.memory_space<vmem>>, %arg5: memref<2x3xf32, #tpu.memory_space<smem>>, %arg6: memref<2x4x256xf32, #tpu.memory_space<vmem>>) attributes {dimension_semantics = [#tpu.dimension_semantics<parallel>], iteration_bounds = array<i64: 1>, scalar_prefetch = 0 : i64, scratch_operands = 0 : i64, tpu.core_type = #tpu.core_type<tc>, window_params = [{transform_indices = @transform_0, window_bounds = array<i64: 2, 4, 256>}, {pipeline_mode = #tpu.pipeline_mode<synchronous>, transform_indices = @transform_1, window_bounds = array<i64: 4, 4, 36>}, {pipeline_mode = #tpu.pipeline_mode<synchronous>, transform_indices = @transform_2, window_bounds = array<i64: 4, 4, 1>}, {pipeline_mode = #tpu.pipeline_mode<synchronous>, transform_indices = @transform_3, window_bounds = array<i64: 9, 512>}, {transform_indices = @transform_4, window_bounds = array<i64: 2, 3>}, {transform_indices = @transform_5, window_bounds = array<i64: 2, 4, 256>}]} {
    %c0 = arith.constant 0 : index
    %c0_0 = arith.constant 0 : index
    %c0_1 = arith.constant 0 : index
    %0 = vector.load %arg1[%c0, %c0_0, %c0_1] : memref<2x4x256xf32, #tpu.memory_space<vmem>>, vector<2x4x256xf32>
    %1 = vector.extract_strided_slice %0 {offsets = [0, 0, 0], sizes = [1, 4, 256], strides = [1, 1, 1]} : vector<2x4x256xf32> to vector<1x4x256xf32>
    %2 = vector.shape_cast %1 : vector<1x4x256xf32> to vector<4x256xf32>
    %3 = vector.extract_strided_slice %0 {offsets = [1, 0, 0], sizes = [1, 4, 256], strides = [1, 1, 1]} : vector<2x4x256xf32> to vector<1x4x256xf32>
    %4 = vector.shape_cast %3 : vector<1x4x256xf32> to vector<4x256xf32>
    %5 = tpu.concatenate %2, %4 in 1 : vector<4x256xf32>, vector<4x256xf32> -> vector<4x512xf32>
    %c0_2 = arith.constant 0 : index
    %c0_3 = arith.constant 0 : index
    %c0_4 = arith.constant 0 : index
    %6 = vector.load %arg2[%c0_2, %c0_3, %c0_4] : memref<4x4x36xf32, #tpu.memory_space<vmem>>, vector<4x4x36xf32>
    %c0_5 = arith.constant 0 : index
    %c0_6 = arith.constant 0 : index
    %c0_7 = arith.constant 0 : index
    %7 = vector.load %arg3[%c0_5, %c0_6, %c0_7] : memref<4x4x1xf32, #tpu.memory_space<vmem>>, vector<4x4x1xf32>
    %c0_8 = arith.constant 0 : index
    %c0_9 = arith.constant 0 : index
    %8 = vector.load %arg4[%c0_8, %c0_9] : memref<9x512xf32, #tpu.memory_space<vmem>>, vector<9x512xf32>
    %9 = vector.extract_strided_slice %8 {offsets = [0, 0], sizes = [1, 512], strides = [1, 1]} : vector<9x512xf32> to vector<1x512xf32>
    %10 = vector.extract_strided_slice %8 {offsets = [1, 0], sizes = [1, 512], strides = [1, 1]} : vector<9x512xf32> to vector<1x512xf32>
    %11 = vector.extract_strided_slice %8 {offsets = [2, 0], sizes = [1, 512], strides = [1, 1]} : vector<9x512xf32> to vector<1x512xf32>
    %12 = vector.extract_strided_slice %8 {offsets = [3, 0], sizes = [1, 512], strides = [1, 1]} : vector<9x512xf32> to vector<1x512xf32>
    %13 = vector.extract_strided_slice %8 {offsets = [5, 0], sizes = [1, 512], strides = [1, 1]} : vector<9x512xf32> to vector<1x512xf32>
    %14 = vector.extract_strided_slice %8 {offsets = [6, 0], sizes = [1, 512], strides = [1, 1]} : vector<9x512xf32> to vector<1x512xf32>
    %15 = vector.extract_strided_slice %8 {offsets = [7, 0], sizes = [1, 512], strides = [1, 1]} : vector<9x512xf32> to vector<1x512xf32>
    %16 = vector.extract_strided_slice %8 {offsets = [8, 0], sizes = [1, 512], strides = [1, 1]} : vector<9x512xf32> to vector<1x512xf32>
    %c17_i32 = arith.constant 17 : i32
    %17 = tpu.dynamic_rotate %5 by %c17_i32 dim 1 : vector<4x512xf32>, i32 -> vector<4x512xf32>
    %18 = vector.broadcast %9 : vector<1x512xf32> to vector<4x512xf32>
    %19 = arith.mulf %17, %18 : vector<4x512xf32>
    %c16_i32 = arith.constant 16 : i32
    %20 = tpu.dynamic_rotate %5 by %c16_i32 dim 1 : vector<4x512xf32>, i32 -> vector<4x512xf32>
    %21 = vector.broadcast %10 : vector<1x512xf32> to vector<4x512xf32>
    %22 = arith.mulf %20, %21 : vector<4x512xf32>
    %c15_i32 = arith.constant 15 : i32
    %23 = tpu.dynamic_rotate %5 by %c15_i32 dim 1 : vector<4x512xf32>, i32 -> vector<4x512xf32>
    %24 = vector.broadcast %11 : vector<1x512xf32> to vector<4x512xf32>
    %25 = arith.mulf %23, %24 : vector<4x512xf32>
    %c1_i32 = arith.constant 1 : i32
    %26 = tpu.dynamic_rotate %5 by %c1_i32 dim 1 : vector<4x512xf32>, i32 -> vector<4x512xf32>
    %27 = vector.broadcast %12 : vector<1x512xf32> to vector<4x512xf32>
    %28 = arith.mulf %26, %27 : vector<4x512xf32>
    %c511_i32 = arith.constant 511 : i32
    %29 = tpu.dynamic_rotate %5 by %c511_i32 dim 1 : vector<4x512xf32>, i32 -> vector<4x512xf32>
    %30 = vector.broadcast %13 : vector<1x512xf32> to vector<4x512xf32>
    %31 = arith.mulf %29, %30 : vector<4x512xf32>
    %c497_i32 = arith.constant 497 : i32
    %32 = tpu.dynamic_rotate %5 by %c497_i32 dim 1 : vector<4x512xf32>, i32 -> vector<4x512xf32>
    %33 = vector.broadcast %14 : vector<1x512xf32> to vector<4x512xf32>
    %34 = arith.mulf %32, %33 : vector<4x512xf32>
    %c496_i32 = arith.constant 496 : i32
    %35 = tpu.dynamic_rotate %5 by %c496_i32 dim 1 : vector<4x512xf32>, i32 -> vector<4x512xf32>
    %36 = vector.broadcast %15 : vector<1x512xf32> to vector<4x512xf32>
    %37 = arith.mulf %35, %36 : vector<4x512xf32>
    %c495_i32 = arith.constant 495 : i32
    %38 = tpu.dynamic_rotate %5 by %c495_i32 dim 1 : vector<4x512xf32>, i32 -> vector<4x512xf32>
    %39 = vector.broadcast %16 : vector<1x512xf32> to vector<4x512xf32>
    %40 = arith.mulf %38, %39 : vector<4x512xf32>
    %41 = tpu.concatenate %19, %22, %25, %28, %5, %31, %34, %37, %40 in 0 : vector<4x512xf32>, vector<4x512xf32>, vector<4x512xf32>, vector<4x512xf32>, vector<4x512xf32>, vector<4x512xf32>, vector<4x512xf32>, vector<4x512xf32>, vector<4x512xf32> -> vector<36x512xf32>
    %42 = vector.extract_strided_slice %6 {offsets = [0, 0, 0], sizes = [1, 4, 36], strides = [1, 1, 1]} : vector<4x4x36xf32> to vector<1x4x36xf32>
    %43 = vector.shape_cast %42 : vector<1x4x36xf32> to vector<4x36xf32>
    %cst = arith.constant dense<0.000000e+00> : vector<4x512xf32>
    %44 = tpu.matmul %43, %41, %cst {dimension_numbers = #tpu.dot_dimension_numbers<[1], [0], [0], [1], [0, 0, 1, 1], [], []>} : vector<4x36xf32>, vector<36x512xf32>, vector<4x512xf32> -> vector<4x512xf32>
    %45 = vector.extract_strided_slice %7 {offsets = [0, 0, 0], sizes = [1, 4, 1], strides = [1, 1, 1]} : vector<4x4x1xf32> to vector<1x4x1xf32>
    %46 = vector.shape_cast %45 : vector<1x4x1xf32> to vector<4x1xf32>
    %47 = vector.broadcast %46 : vector<4x1xf32> to vector<4x512xf32>
    %48 = arith.addf %44, %47 : vector<4x512xf32>
    %c0_10 = arith.constant 0 : index
    %c0_11 = arith.constant 0 : index
    %49 = memref.load %arg5[%c0_10, %c0_11] : memref<2x3xf32, #tpu.memory_space<smem>>
    %cst_12 = arith.constant 0.000000e+00 : f32
    %50 = vector.broadcast %cst_12 : f32 to vector<4x512xf32>
    %51 = arith.cmpf oge, %48, %50 : vector<4x512xf32>
    %52 = vector.broadcast %49 : f32 to vector<4x512xf32>
    %53 = arith.mulf %52, %48 : vector<4x512xf32>
    %54 = arith.select %51, %48, %53 : vector<4x512xi1>, vector<4x512xf32>
    %c17_i32_13 = arith.constant 17 : i32
    %55 = tpu.dynamic_rotate %54 by %c17_i32_13 dim 1 : vector<4x512xf32>, i32 -> vector<4x512xf32>
    %56 = vector.broadcast %9 : vector<1x512xf32> to vector<4x512xf32>
    %57 = arith.mulf %55, %56 : vector<4x512xf32>
    %c16_i32_14 = arith.constant 16 : i32
    %58 = tpu.dynamic_rotate %54 by %c16_i32_14 dim 1 : vector<4x512xf32>, i32 -> vector<4x512xf32>
    %59 = vector.broadcast %10 : vector<1x512xf32> to vector<4x512xf32>
    %60 = arith.mulf %58, %59 : vector<4x512xf32>
    %c15_i32_15 = arith.constant 15 : i32
    %61 = tpu.dynamic_rotate %54 by %c15_i32_15 dim 1 : vector<4x512xf32>, i32 -> vector<4x512xf32>
    %62 = vector.broadcast %11 : vector<1x512xf32> to vector<4x512xf32>
    %63 = arith.mulf %61, %62 : vector<4x512xf32>
    %c1_i32_16 = arith.constant 1 : i32
    %64 = tpu.dynamic_rotate %54 by %c1_i32_16 dim 1 : vector<4x512xf32>, i32 -> vector<4x512xf32>
    %65 = vector.broadcast %12 : vector<1x512xf32> to vector<4x512xf32>
    %66 = arith.mulf %64, %65 : vector<4x512xf32>
    %c511_i32_17 = arith.constant 511 : i32
    %67 = tpu.dynamic_rotate %54 by %c511_i32_17 dim 1 : vector<4x512xf32>, i32 -> vector<4x512xf32>
    %68 = vector.broadcast %13 : vector<1x512xf32> to vector<4x512xf32>
    %69 = arith.mulf %67, %68 : vector<4x512xf32>
    %c497_i32_18 = arith.constant 497 : i32
    %70 = tpu.dynamic_rotate %54 by %c497_i32_18 dim 1 : vector<4x512xf32>, i32 -> vector<4x512xf32>
    %71 = vector.broadcast %14 : vector<1x512xf32> to vector<4x512xf32>
    %72 = arith.mulf %70, %71 : vector<4x512xf32>
    %c496_i32_19 = arith.constant 496 : i32
    %73 = tpu.dynamic_rotate %54 by %c496_i32_19 dim 1 : vector<4x512xf32>, i32 -> vector<4x512xf32>
    %74 = vector.broadcast %15 : vector<1x512xf32> to vector<4x512xf32>
    %75 = arith.mulf %73, %74 : vector<4x512xf32>
    %c495_i32_20 = arith.constant 495 : i32
    %76 = tpu.dynamic_rotate %54 by %c495_i32_20 dim 1 : vector<4x512xf32>, i32 -> vector<4x512xf32>
    %77 = vector.broadcast %16 : vector<1x512xf32> to vector<4x512xf32>
    %78 = arith.mulf %76, %77 : vector<4x512xf32>
    %79 = tpu.concatenate %57, %60, %63, %66, %54, %69, %72, %75, %78 in 0 : vector<4x512xf32>, vector<4x512xf32>, vector<4x512xf32>, vector<4x512xf32>, vector<4x512xf32>, vector<4x512xf32>, vector<4x512xf32>, vector<4x512xf32>, vector<4x512xf32> -> vector<36x512xf32>
    %80 = vector.extract_strided_slice %6 {offsets = [1, 0, 0], sizes = [1, 4, 36], strides = [1, 1, 1]} : vector<4x4x36xf32> to vector<1x4x36xf32>
    %81 = vector.shape_cast %80 : vector<1x4x36xf32> to vector<4x36xf32>
    %cst_21 = arith.constant dense<0.000000e+00> : vector<4x512xf32>
    %82 = tpu.matmul %81, %79, %cst_21 {dimension_numbers = #tpu.dot_dimension_numbers<[1], [0], [0], [1], [0, 0, 1, 1], [], []>} : vector<4x36xf32>, vector<36x512xf32>, vector<4x512xf32> -> vector<4x512xf32>
    %83 = vector.extract_strided_slice %7 {offsets = [1, 0, 0], sizes = [1, 4, 1], strides = [1, 1, 1]} : vector<4x4x1xf32> to vector<1x4x1xf32>
    %84 = vector.shape_cast %83 : vector<1x4x1xf32> to vector<4x1xf32>
    %85 = vector.broadcast %84 : vector<4x1xf32> to vector<4x512xf32>
    %86 = arith.addf %82, %85 : vector<4x512xf32>
    %c0_22 = arith.constant 0 : index
    %c1 = arith.constant 1 : index
    %87 = memref.load %arg5[%c0_22, %c1] : memref<2x3xf32, #tpu.memory_space<smem>>
    %cst_23 = arith.constant 0.000000e+00 : f32
    %88 = vector.broadcast %cst_23 : f32 to vector<4x512xf32>
    %89 = arith.cmpf oge, %86, %88 : vector<4x512xf32>
    %90 = vector.broadcast %87 : f32 to vector<4x512xf32>
    %91 = arith.mulf %90, %86 : vector<4x512xf32>
    %92 = arith.select %89, %86, %91 : vector<4x512xi1>, vector<4x512xf32>
    %c0_24 = arith.constant 0 : index
    %c2 = arith.constant 2 : index
    %93 = memref.load %arg5[%c0_24, %c2] : memref<2x3xf32, #tpu.memory_space<smem>>
    %cst_25 = arith.constant 0.000000e+00 : f32
    %94 = vector.broadcast %cst_25 : f32 to vector<4x512xf32>
    %95 = arith.cmpf oge, %92, %94 : vector<4x512xf32>
    %96 = vector.broadcast %93 : f32 to vector<4x512xf32>
    %97 = arith.mulf %96, %92 : vector<4x512xf32>
    %98 = arith.select %95, %92, %97 : vector<4x512xi1>, vector<4x512xf32>
    %99 = arith.addf %98, %5 : vector<4x512xf32>
    %c17_i32_26 = arith.constant 17 : i32
    %100 = tpu.dynamic_rotate %99 by %c17_i32_26 dim 1 : vector<4x512xf32>, i32 -> vector<4x512xf32>
    %101 = vector.broadcast %9 : vector<1x512xf32> to vector<4x512xf32>
    %102 = arith.mulf %100, %101 : vector<4x512xf32>
    %c16_i32_27 = arith.constant 16 : i32
    %103 = tpu.dynamic_rotate %99 by %c16_i32_27 dim 1 : vector<4x512xf32>, i32 -> vector<4x512xf32>
    %104 = vector.broadcast %10 : vector<1x512xf32> to vector<4x512xf32>
    %105 = arith.mulf %103, %104 : vector<4x512xf32>
    %c15_i32_28 = arith.constant 15 : i32
    %106 = tpu.dynamic_rotate %99 by %c15_i32_28 dim 1 : vector<4x512xf32>, i32 -> vector<4x512xf32>
    %107 = vector.broadcast %11 : vector<1x512xf32> to vector<4x512xf32>
    %108 = arith.mulf %106, %107 : vector<4x512xf32>
    %c1_i32_29 = arith.constant 1 : i32
    %109 = tpu.dynamic_rotate %99 by %c1_i32_29 dim 1 : vector<4x512xf32>, i32 -> vector<4x512xf32>
    %110 = vector.broadcast %12 : vector<1x512xf32> to vector<4x512xf32>
    %111 = arith.mulf %109, %110 : vector<4x512xf32>
    %c511_i32_30 = arith.constant 511 : i32
    %112 = tpu.dynamic_rotate %99 by %c511_i32_30 dim 1 : vector<4x512xf32>, i32 -> vector<4x512xf32>
    %113 = vector.broadcast %13 : vector<1x512xf32> to vector<4x512xf32>
    %114 = arith.mulf %112, %113 : vector<4x512xf32>
    %c497_i32_31 = arith.constant 497 : i32
    %115 = tpu.dynamic_rotate %99 by %c497_i32_31 dim 1 : vector<4x512xf32>, i32 -> vector<4x512xf32>
    %116 = vector.broadcast %14 : vector<1x512xf32> to vector<4x512xf32>
    %117 = arith.mulf %115, %116 : vector<4x512xf32>
    %c496_i32_32 = arith.constant 496 : i32
    %118 = tpu.dynamic_rotate %99 by %c496_i32_32 dim 1 : vector<4x512xf32>, i32 -> vector<4x512xf32>
    %119 = vector.broadcast %15 : vector<1x512xf32> to vector<4x512xf32>
    %120 = arith.mulf %118, %119 : vector<4x512xf32>
    %c495_i32_33 = arith.constant 495 : i32
    %121 = tpu.dynamic_rotate %99 by %c495_i32_33 dim 1 : vector<4x512xf32>, i32 -> vector<4x512xf32>
    %122 = vector.broadcast %16 : vector<1x512xf32> to vector<4x512xf32>
    %123 = arith.mulf %121, %122 : vector<4x512xf32>
    %124 = tpu.concatenate %102, %105, %108, %111, %99, %114, %117, %120, %123 in 0 : vector<4x512xf32>, vector<4x512xf32>, vector<4x512xf32>, vector<4x512xf32>, vector<4x512xf32>, vector<4x512xf32>, vector<4x512xf32>, vector<4x512xf32>, vector<4x512xf32> -> vector<36x512xf32>
    %125 = vector.extract_strided_slice %6 {offsets = [2, 0, 0], sizes = [1, 4, 36], strides = [1, 1, 1]} : vector<4x4x36xf32> to vector<1x4x36xf32>
    %126 = vector.shape_cast %125 : vector<1x4x36xf32> to vector<4x36xf32>
    %cst_34 = arith.constant dense<0.000000e+00> : vector<4x512xf32>
    %127 = tpu.matmul %126, %124, %cst_34 {dimension_numbers = #tpu.dot_dimension_numbers<[1], [0], [0], [1], [0, 0, 1, 1], [], []>} : vector<4x36xf32>, vector<36x512xf32>, vector<4x512xf32> -> vector<4x512xf32>
    %128 = vector.extract_strided_slice %7 {offsets = [2, 0, 0], sizes = [1, 4, 1], strides = [1, 1, 1]} : vector<4x4x1xf32> to vector<1x4x1xf32>
    %129 = vector.shape_cast %128 : vector<1x4x1xf32> to vector<4x1xf32>
    %130 = vector.broadcast %129 : vector<4x1xf32> to vector<4x512xf32>
    %131 = arith.addf %127, %130 : vector<4x512xf32>
    %c1_35 = arith.constant 1 : index
    %c0_36 = arith.constant 0 : index
    %132 = memref.load %arg5[%c1_35, %c0_36] : memref<2x3xf32, #tpu.memory_space<smem>>
    %cst_37 = arith.constant 0.000000e+00 : f32
    %133 = vector.broadcast %cst_37 : f32 to vector<4x512xf32>
    %134 = arith.cmpf oge, %131, %133 : vector<4x512xf32>
    %135 = vector.broadcast %132 : f32 to vector<4x512xf32>
    %136 = arith.mulf %135, %131 : vector<4x512xf32>
    %137 = arith.select %134, %131, %136 : vector<4x512xi1>, vector<4x512xf32>
    %c17_i32_38 = arith.constant 17 : i32
    %138 = tpu.dynamic_rotate %137 by %c17_i32_38 dim 1 : vector<4x512xf32>, i32 -> vector<4x512xf32>
    %139 = vector.broadcast %9 : vector<1x512xf32> to vector<4x512xf32>
    %140 = arith.mulf %138, %139 : vector<4x512xf32>
    %c16_i32_39 = arith.constant 16 : i32
    %141 = tpu.dynamic_rotate %137 by %c16_i32_39 dim 1 : vector<4x512xf32>, i32 -> vector<4x512xf32>
    %142 = vector.broadcast %10 : vector<1x512xf32> to vector<4x512xf32>
    %143 = arith.mulf %141, %142 : vector<4x512xf32>
    %c15_i32_40 = arith.constant 15 : i32
    %144 = tpu.dynamic_rotate %137 by %c15_i32_40 dim 1 : vector<4x512xf32>, i32 -> vector<4x512xf32>
    %145 = vector.broadcast %11 : vector<1x512xf32> to vector<4x512xf32>
    %146 = arith.mulf %144, %145 : vector<4x512xf32>
    %c1_i32_41 = arith.constant 1 : i32
    %147 = tpu.dynamic_rotate %137 by %c1_i32_41 dim 1 : vector<4x512xf32>, i32 -> vector<4x512xf32>
    %148 = vector.broadcast %12 : vector<1x512xf32> to vector<4x512xf32>
    %149 = arith.mulf %147, %148 : vector<4x512xf32>
    %c511_i32_42 = arith.constant 511 : i32
    %150 = tpu.dynamic_rotate %137 by %c511_i32_42 dim 1 : vector<4x512xf32>, i32 -> vector<4x512xf32>
    %151 = vector.broadcast %13 : vector<1x512xf32> to vector<4x512xf32>
    %152 = arith.mulf %150, %151 : vector<4x512xf32>
    %c497_i32_43 = arith.constant 497 : i32
    %153 = tpu.dynamic_rotate %137 by %c497_i32_43 dim 1 : vector<4x512xf32>, i32 -> vector<4x512xf32>
    %154 = vector.broadcast %14 : vector<1x512xf32> to vector<4x512xf32>
    %155 = arith.mulf %153, %154 : vector<4x512xf32>
    %c496_i32_44 = arith.constant 496 : i32
    %156 = tpu.dynamic_rotate %137 by %c496_i32_44 dim 1 : vector<4x512xf32>, i32 -> vector<4x512xf32>
    %157 = vector.broadcast %15 : vector<1x512xf32> to vector<4x512xf32>
    %158 = arith.mulf %156, %157 : vector<4x512xf32>
    %c495_i32_45 = arith.constant 495 : i32
    %159 = tpu.dynamic_rotate %137 by %c495_i32_45 dim 1 : vector<4x512xf32>, i32 -> vector<4x512xf32>
    %160 = vector.broadcast %16 : vector<1x512xf32> to vector<4x512xf32>
    %161 = arith.mulf %159, %160 : vector<4x512xf32>
    %162 = tpu.concatenate %140, %143, %146, %149, %137, %152, %155, %158, %161 in 0 : vector<4x512xf32>, vector<4x512xf32>, vector<4x512xf32>, vector<4x512xf32>, vector<4x512xf32>, vector<4x512xf32>, vector<4x512xf32>, vector<4x512xf32>, vector<4x512xf32> -> vector<36x512xf32>
    %163 = vector.extract_strided_slice %6 {offsets = [3, 0, 0], sizes = [1, 4, 36], strides = [1, 1, 1]} : vector<4x4x36xf32> to vector<1x4x36xf32>
    %164 = vector.shape_cast %163 : vector<1x4x36xf32> to vector<4x36xf32>
    %cst_46 = arith.constant dense<0.000000e+00> : vector<4x512xf32>
    %165 = tpu.matmul %164, %162, %cst_46 {dimension_numbers = #tpu.dot_dimension_numbers<[1], [0], [0], [1], [0, 0, 1, 1], [], []>} : vector<4x36xf32>, vector<36x512xf32>, vector<4x512xf32> -> vector<4x512xf32>
    %166 = vector.extract_strided_slice %7 {offsets = [3, 0, 0], sizes = [1, 4, 1], strides = [1, 1, 1]} : vector<4x4x1xf32> to vector<1x4x1xf32>
    %167 = vector.shape_cast %166 : vector<1x4x1xf32> to vector<4x1xf32>
    %168 = vector.broadcast %167 : vector<4x1xf32> to vector<4x512xf32>
    %169 = arith.addf %165, %168 : vector<4x512xf32>
    %c1_47 = arith.constant 1 : index
    %c1_48 = arith.constant 1 : index
    %170 = memref.load %arg5[%c1_47, %c1_48] : memref<2x3xf32, #tpu.memory_space<smem>>
    %cst_49 = arith.constant 0.000000e+00 : f32
    %171 = vector.broadcast %cst_49 : f32 to vector<4x512xf32>
    %172 = arith.cmpf oge, %169, %171 : vector<4x512xf32>
    %173 = vector.broadcast %170 : f32 to vector<4x512xf32>
    %174 = arith.mulf %173, %169 : vector<4x512xf32>
    %175 = arith.select %172, %169, %174 : vector<4x512xi1>, vector<4x512xf32>
    %c1_50 = arith.constant 1 : index
    %c2_51 = arith.constant 2 : index
    %176 = memref.load %arg5[%c1_50, %c2_51] : memref<2x3xf32, #tpu.memory_space<smem>>
    %cst_52 = arith.constant 0.000000e+00 : f32
    %177 = vector.broadcast %cst_52 : f32 to vector<4x512xf32>
    %178 = arith.cmpf oge, %175, %177 : vector<4x512xf32>
    %179 = vector.broadcast %176 : f32 to vector<4x512xf32>
    %180 = arith.mulf %179, %175 : vector<4x512xf32>
    %181 = arith.select %178, %175, %180 : vector<4x512xi1>, vector<4x512xf32>
    %182 = arith.addf %181, %99 : vector<4x512xf32>
    %183 = vector.extract_strided_slice %182 {offsets = [0, 0], sizes = [4, 256], strides = [1, 1]} : vector<4x512xf32> to vector<4x256xf32>
    %c0_53 = arith.constant 0 : index
    %c0_54 = arith.constant 0 : index
    %c0_55 = arith.constant 0 : index
    %184 = vector.load %arg6[%c0_53, %c0_54, %c0_55] : memref<2x4x256xf32, #tpu.memory_space<vmem>>, vector<1x4x256xf32>
    %185 = vector.shape_cast %184 : vector<1x4x256xf32> to vector<4x256xf32>
    %186 = vector.shape_cast %183 : vector<4x256xf32> to vector<1x4x256xf32>
    tpu.vector_store %arg6[%c0_53, %c0_54, %c0_55], %186 {strides = array<i32>} : memref<2x4x256xf32, #tpu.memory_space<vmem>>, vector<1x4x256xf32>,
    %187 = vector.extract_strided_slice %182 {offsets = [0, 256], sizes = [4, 256], strides = [1, 1]} : vector<4x512xf32> to vector<4x256xf32>
    %c1_56 = arith.constant 1 : index
    %c0_57 = arith.constant 0 : index
    %c0_58 = arith.constant 0 : index
    %188 = vector.load %arg6[%c1_56, %c0_57, %c0_58] : memref<2x4x256xf32, #tpu.memory_space<vmem>>, vector<1x4x256xf32>
    %189 = vector.shape_cast %188 : vector<1x4x256xf32> to vector<4x256xf32>
    %190 = vector.shape_cast %187 : vector<4x256xf32> to vector<1x4x256xf32>
    tpu.vector_store %arg6[%c1_56, %c0_57, %c0_58], %190 {strides = array<i32>} : memref<2x4x256xf32, #tpu.memory_space<vmem>>, vector<1x4x256xf32>,
    return
  }
  func.func @transform_0(%arg0: i32) -> (i32, i32, i32) {
    %c0_i32 = arith.constant 0 : i32
    %c0_i32_0 = arith.constant 0 : i32
    %c0_i32_1 = arith.constant 0 : i32
    return %arg0, %c0_i32, %c0_i32_0 : i32, i32, i32
  }
  func.func @transform_1(%arg0: i32) -> (i32, i32, i32) {
    %c0_i32 = arith.constant 0 : i32
    %c0_i32_0 = arith.constant 0 : i32
    %c0_i32_1 = arith.constant 0 : i32
    %c0_i32_2 = arith.constant 0 : i32
    return %c0_i32, %c0_i32_0, %c0_i32_1 : i32, i32, i32
  }
  func.func @transform_2(%arg0: i32) -> (i32, i32, i32) {
    %c0_i32 = arith.constant 0 : i32
    %c0_i32_0 = arith.constant 0 : i32
    %c0_i32_1 = arith.constant 0 : i32
    %c0_i32_2 = arith.constant 0 : i32
    return %c0_i32, %c0_i32_0, %c0_i32_1 : i32, i32, i32
  }
  func.func @transform_3(%arg0: i32) -> (i32, i32) {
    %c0_i32 = arith.constant 0 : i32
    %c0_i32_0 = arith.constant 0 : i32
    %c0_i32_1 = arith.constant 0 : i32
    return %c0_i32, %c0_i32_0 : i32, i32
  }
  func.func @transform_4(%arg0: i32) -> (i32, i32) {
    %c0_i32 = arith.constant 0 : i32
    %c0_i32_0 = arith.constant 0 : i32
    %c0_i32_1 = arith.constant 0 : i32
    return %c0_i32, %c0_i32_0 : i32, i32
  }
  func.func @transform_5(%arg0: i32) -> (i32, i32, i32) {
    %c0_i32 = arith.constant 0 : i32
    %c0_i32_0 = arith.constant 0 : i32
    %c0_i32_1 = arith.constant 0 : i32
    return %arg0, %c0_i32, %c0_i32_0 : i32, i32, i32
  }
}

</mosaic_0001>

<llo_original>
// kernel: resblock_forward.1
$region0: #{resblock_forward.1}
  #allocation0 [shape = 'u32[]', space=smem, size = 0x4, offset = 0x4, fixed_abs, tag = 'smem constant byte address 0x4 - core index']
  #allocation1 [shape = 'u32[144,128]{1,0:T(1,128)}', space=vmem, size = 0x12000, scoped, tag = 'internal scratch']
  %s0 = inlined_call_operand.vmem [shape: f32[2,4,256], index: 0, kind: input, shape index: {}]
  %s1 = inlined_call_operand.vmem [shape: f32[4,4,36], index: 1, kind: input, shape index: {}]
  %s2 = inlined_call_operand.vmem [shape: f32[4,4,1], index: 2, kind: input, shape index: {}]
  %s3 = inlined_call_operand.vmem [shape: f32[9,512], index: 3, kind: input, shape index: {}]
  %s4 = inlined_call_operand.vmem [shape: f32[2,3], index: 4, kind: input, shape index: {}]
  %s5 = inlined_call_operand.vmem [shape: f32[2,4,256], index: 5, kind: output, shape index: {}]
  %s6 = sld [smem:[#allocation0]]
  $region34: #{resblock_forward.1} parent=0
    _
  %s8 = ssub.s32 1, %s6
  %s9 = scalar_select 0, %s8, %s6
  $region1: #{resblock_forward.1} parent=0
    #allocation2 [shape = 'u8[1024]{0}', space=smem, size = 0x400, scoped, tag = 'input window, operand 4, single buffered']
    #allocation3 [shape = 's32[1]{0}', space=sflag, size = 0x4, scoped, tag = 'scoped memory for resblock_forward.1']
    %10 = vsyncpa [#allocation3], 0
    // Predicated region
    $region2: #{resblock_forward.1} parent=1 // pred_check
      _
    $region3: #{resblock_forward.1} parent=1 // pred_check_branch
      %12 = sbr.rel (0) target = $region5
    $region4: #{resblock_forward.1} parent=1 // pred_region
      _
    $region5: #{resblock_forward.1} parent=1 // pred_fallthru
      _
    // Predicated region
    $region6: #{resblock_forward.1} parent=1 // pred_check
      _
    $region7: #{resblock_forward.1} parent=1 // pred_check_branch
      %14 = sbr.rel (0) target = $region9
    $region8: #{resblock_forward.1} parent=1 // pred_region
      _
    $region9: #{resblock_forward.1} parent=1 // pred_fallthru
      _
    // Predicated region
    $region10: #{resblock_forward.1} parent=1 // pred_check
      _
    $region11: #{resblock_forward.1} parent=1 // pred_check_branch
      %16 = sbr.rel (0) target = $region13
    $region12: #{resblock_forward.1} parent=1 // pred_region
      _
    $region13: #{resblock_forward.1} parent=1 // pred_fallthru
      _
    // Predicated region
    $region14: #{resblock_forward.1} parent=1 // pred_check
      _
    $region15: #{resblock_forward.1} parent=1 // pred_check_branch
      %18 = sbr.rel (0) target = $region17
    $region16: #{resblock_forward.1} parent=1 // pred_region
      _
    $region17: #{resblock_forward.1} parent=1 // pred_fallthru
      _
    // Predicated region
    $region18: #{resblock_forward.1} parent=1 // pred_check
      _
    $region19: #{resblock_forward.1} parent=1 // pred_check_branch
      %20 = sbr.rel (0) target = $region21
    $region20: #{resblock_forward.1} parent=1 // pred_region
      %s22 = ssub.s32 32, 32
      %23 = vsyncadd [#allocation3], %s22
      %s25 = sshll.u32 %s4, 4
      %s26 = int_to_ptr.vmem [resolvable:$true] %s25
      %28 = dma.vmem_to_smem %s26, 32, [#allocation2], [#allocation3]
    $region21: #{resblock_forward.1} parent=1 // pred_fallthru
      _
    // Predicated region
    $region22: #{resblock_forward.1} parent=1 // pred_check
      _
    $region23: #{resblock_forward.1} parent=1 // pred_check_branch
      %30 = sbr.rel (0) target = $region25
    $region24: #{resblock_forward.1} parent=1 // pred_region
      %31 = dma.done [#allocation3], 32
    $region25: #{resblock_forward.1} parent=1 // pred_fallthru
      _
    %32 = sfence
    %v33 = vld [vmem:[%s0] sm:$0xff]
    %v34 = vld [vmem:[%s0 + $0x8] sm:$0xff]
    %v36 = vcombine.high %v33, %v33
    %v39 = vcombine.high %v34, %v34
    %v41 = vld [vmem:[%s1] sm:$0xf]
    %v42 = vld [vmem:[%s1 + $0x4] sm:$0xf]
    %v43 = vld [vmem:[%s1 + $0x8] sm:$0xf]
    %v44 = vld [vmem:[%s1 + $0xc] sm:$0xf]
    %v45 = vld [vmem:[%s2] sm:$0xf]
    %v46 = vld [vmem:[%s2 + $0x4] sm:$0xf]
    %v47 = vld [vmem:[%s2 + $0x8] sm:$0xf]
    %v48 = vld [vmem:[%s2 + $0xc] sm:$0xf]
    %v49 = vld [vmem:[%s3] sm:$0xff]
    %v50 = vld [vmem:[%s3 + $0x8] sm:$0xff]
    %v51 = vld [vmem:[%s3 + $0x10] sm:$0xff]
    %v52 = vld [vmem:[%s3 + $0x18] sm:$0xff]
    %v53 = vld [vmem:[%s3 + $0x20] sm:$0x1]
    %v54 = vld [vmem:[%s3 + $0x28] sm:$0x1]
    %v55 = vld [vmem:[%s3 + $0x30] sm:$0x1]
    %v56 = vld [vmem:[%s3 + $0x38] sm:$0x1]
    %57 = vrot.lane.b32.xlu0 %v33, 17
    %v58 = vpop.permute.xlu0 %57
    %59 = vrot.lane.b32.xlu0 %v36, 17
    %v60 = vpop.permute.xlu0 %59
    %61 = vrot.lane.b32.xlu0 %v34, 17
    %v62 = vpop.permute.xlu0 %61
    %63 = vrot.lane.b32.xlu0 %v39, 17
    %v64 = vpop.permute.xlu0 %63
    %v65 = vlaneseq
    %v66 = vand.u32 %v65, 127
    %vm67 = vcmp.lt.s32.totalorder %v66, 17
    %v68 = vsel %vm67, %v62, %v64
    %v69 = vsel %vm67, %v60, %v62
    %v70 = vsel %vm67, %v58, %v60
    %v71 = vsel %vm67, %v64, %v58
    %v72 = vlaneseq
    %v73 = vshrl.u32 %v72, 7
    %v74 = vsub.s32 0, %v73
    %v75 = vrot.slane %v49, %v74
    %v76 = vlaneseq
    %v77 = vshrl.u32 %v76, 7
    %v78 = vsub.s32 0, %v77
    %v79 = vrot.slane %v50, %v78
    %v80 = vlaneseq
    %v81 = vshrl.u32 %v80, 7
    %v82 = vsub.s32 0, %v81
    %v83 = vrot.slane %v51, %v82
    %v84 = vlaneseq
    %v85 = vshrl.u32 %v84, 7
    %v86 = vsub.s32 0, %v85
    %v87 = vrot.slane %v52, %v86
    %v88 = vmul.f32 %v71, %v75
    %v89 = vmul.f32 %v70, %v79
    %v90 = vmul.f32 %v69, %v83
    %v91 = vmul.f32 %v68, %v87
    %92 = vrot.lane.b32.xlu0 %v33, 16
    %v93 = vpop.permute.xlu0 %92
    %94 = vrot.lane.b32.xlu0 %v36, 16
    %v95 = vpop.permute.xlu0 %94
    %96 = vrot.lane.b32.xlu0 %v34, 16
    %v97 = vpop.permute.xlu0 %96
    %98 = vrot.lane.b32.xlu0 %v39, 16
    %v99 = vpop.permute.xlu0 %98
    %vm100 = vcmp.lt.s32.totalorder %v66, 16
    %v101 = vsel %vm100, %v97, %v99
    %v102 = vsel %vm100, %v95, %v97
    %v103 = vsel %vm100, %v93, %v95
    %v104 = vsel %vm100, %v99, %v93
    %v105 = vlaneseq
    %v106 = vshrl.u32 %v105, 7
    %v107 = vsub.s32 1, %v106
    %v108 = vrot.slane %v49, %v107
    %v109 = vlaneseq
    %v110 = vshrl.u32 %v109, 7
    %v111 = vsub.s32 1, %v110
    %v112 = vrot.slane %v50, %v111
    %v113 = vlaneseq
    %v114 = vshrl.u32 %v113, 7
    %v115 = vsub.s32 1, %v114
    %v116 = vrot.slane %v51, %v115
    %v117 = vlaneseq
    %v118 = vshrl.u32 %v117, 7
    %v119 = vsub.s32 1, %v118
    %v120 = vrot.slane %v52, %v119
    %v121 = vmul.f32 %v104, %v108
    %v122 = vmul.f32 %v103, %v112
    %v123 = vmul.f32 %v102, %v116
    %v124 = vmul.f32 %v101, %v120
    %125 = vrot.lane.b32.xlu0 %v33, 15
    %v126 = vpop.permute.xlu0 %125
    %127 = vrot.lane.b32.xlu0 %v36, 15
    %v128 = vpop.permute.xlu0 %127
    %129 = vrot.lane.b32.xlu0 %v34, 15
    %v130 = vpop.permute.xlu0 %129
    %131 = vrot.lane.b32.xlu0 %v39, 15
    %v132 = vpop.permute.xlu0 %131
    %vm133 = vcmp.lt.s32.totalorder %v66, 15
    %v134 = vsel %vm133, %v130, %v132
    %v135 = vsel %vm133, %v128, %v130
    %v136 = vsel %vm133, %v126, %v128
    %v137 = vsel %vm133, %v132, %v126
    %v138 = vlaneseq
    %v139 = vshrl.u32 %v138, 7
    %v140 = vsub.s32 2, %v139
    %v141 = vrot.slane %v49, %v140
    %v142 = vlaneseq
    %v143 = vshrl.u32 %v142, 7
    %v144 = vsub.s32 2, %v143
    %v145 = vrot.slane %v50, %v144
    %v146 = vlaneseq
    %v147 = vshrl.u32 %v146, 7
    %v148 = vsub.s32 2, %v147
    %v149 = vrot.slane %v51, %v148
    %v150 = vlaneseq
    %v151 = vshrl.u32 %v150, 7
    %v152 = vsub.s32 2, %v151
    %v153 = vrot.slane %v52, %v152
    %v154 = vmul.f32 %v137, %v141
    %v155 = vmul.f32 %v136, %v145
    %v156 = vmul.f32 %v135, %v149
    %v157 = vmul.f32 %v134, %v153
    %158 = vrot.lane.b32.xlu0 %v33, 1
    %v159 = vpop.permute.xlu0 %158
    %160 = vrot.lane.b32.xlu0 %v36, 1
    %v161 = vpop.permute.xlu0 %160
    %162 = vrot.lane.b32.xlu0 %v34, 1
    %v163 = vpop.permute.xlu0 %162
    %164 = vrot.lane.b32.xlu0 %v39, 1
    %v165 = vpop.permute.xlu0 %164
    %vm166 = vcmp.lt.s32.totalorder %v66, 1
    %v167 = vsel %vm166, %v163, %v165
    %v168 = vsel %vm166, %v161, %v163
    %v169 = vsel %vm166, %v159, %v161
    %v170 = vsel %vm166, %v165, %v159
    %v171 = vlaneseq
    %v172 = vshrl.u32 %v171, 7
    %v173 = vsub.s32 3, %v172
    %v174 = vrot.slane %v49, %v173
    %v175 = vlaneseq
    %v176 = vshrl.u32 %v175, 7
    %v177 = vsub.s32 3, %v176
    %v178 = vrot.slane %v50, %v177
    %v179 = vlaneseq
    %v180 = vshrl.u32 %v179, 7
    %v181 = vsub.s32 3, %v180
    %v182 = vrot.slane %v51, %v181
    %v183 = vlaneseq
    %v184 = vshrl.u32 %v183, 7
    %v185 = vsub.s32 3, %v184
    %v186 = vrot.slane %v52, %v185
    %v187 = vmul.f32 %v170, %v174
    %v188 = vmul.f32 %v169, %v178
    %v189 = vmul.f32 %v168, %v182
    %v190 = vmul.f32 %v167, %v186
    %191 = vrot.lane.b32.xlu0 %v33, 127
    %v192 = vpop.permute.xlu0 %191
    %193 = vrot.lane.b32.xlu0 %v36, 127
    %v194 = vpop.permute.xlu0 %193
    %195 = vrot.lane.b32.xlu0 %v34, 127
    %v196 = vpop.permute.xlu0 %195
    %197 = vrot.lane.b32.xlu0 %v39, 127
    %v198 = vpop.permute.xlu0 %197
    %vm199 = vcmp.lt.s32.totalorder %v66, 127
    %v200 = vsel %vm199, %v196, %v198
    %v201 = vsel %vm199, %v194, %v196
    %v202 = vsel %vm199, %v192, %v194
    %v203 = vsel %vm199, %v198, %v192
    %v204 = vlaneseq
    %v205 = vshrl.u32 %v204, 7
    %v206 = vsub.s32 5, %v205
    %v207 = vrot.slane %v49, %v206
    %v208 = vlaneseq
    %v209 = vshrl.u32 %v208, 7
    %v210 = vsub.s32 5, %v209
    %v211 = vrot.slane %v50, %v210
    %v212 = vlaneseq
    %v213 = vshrl.u32 %v212, 7
    %v214 = vsub.s32 5, %v213
    %v215 = vrot.slane %v51, %v214
    %v216 = vlaneseq
    %v217 = vshrl.u32 %v216, 7
    %v218 = vsub.s32 5, %v217
    %v219 = vrot.slane %v52, %v218
    %v220 = vmul.f32 %v202, %v207
    %v221 = vmul.f32 %v201, %v211
    %v222 = vmul.f32 %v200, %v215
    %v223 = vmul.f32 %v203, %v219
    %224 = vrot.lane.b32.xlu0 %v33, 113
    %v225 = vpop.permute.xlu0 %224
    %226 = vrot.lane.b32.xlu0 %v36, 113
    %v227 = vpop.permute.xlu0 %226
    %228 = vrot.lane.b32.xlu0 %v34, 113
    %v229 = vpop.permute.xlu0 %228
    %230 = vrot.lane.b32.xlu0 %v39, 113
    %v231 = vpop.permute.xlu0 %230
    %vm232 = vcmp.lt.s32.totalorder %v66, 113
    %v233 = vsel %vm232, %v229, %v231
    %v234 = vsel %vm232, %v227, %v229
    %v235 = vsel %vm232, %v225, %v227
    %v236 = vsel %vm232, %v231, %v225
    %v237 = vlaneseq
    %v238 = vshrl.u32 %v237, 7
    %v239 = vsub.s32 6, %v238
    %v240 = vrot.slane %v49, %v239
    %v241 = vlaneseq
    %v242 = vshrl.u32 %v241, 7
    %v243 = vsub.s32 6, %v242
    %v244 = vrot.slane %v50, %v243
    %v245 = vlaneseq
    %v246 = vshrl.u32 %v245, 7
    %v247 = vsub.s32 6, %v246
    %v248 = vrot.slane %v51, %v247
    %v249 = vlaneseq
    %v250 = vshrl.u32 %v249, 7
    %v251 = vsub.s32 6, %v250
    %v252 = vrot.slane %v52, %v251
    %v253 = vmul.f32 %v235, %v240
    %v254 = vmul.f32 %v234, %v244
    %v255 = vmul.f32 %v233, %v248
    %v256 = vmul.f32 %v236, %v252
    %257 = vrot.lane.b32.xlu0 %v33, 112
    %v258 = vpop.permute.xlu0 %257
    %259 = vrot.lane.b32.xlu0 %v36, 112
    %v260 = vpop.permute.xlu0 %259
    %261 = vrot.lane.b32.xlu0 %v34, 112
    %v262 = vpop.permute.xlu0 %261
    %263 = vrot.lane.b32.xlu0 %v39, 112
    %v264 = vpop.permute.xlu0 %263
    %vm265 = vcmp.lt.s32.totalorder %v66, 112
    %v266 = vsel %vm265, %v262, %v264
    %v267 = vsel %vm265, %v260, %v262
    %v268 = vsel %vm265, %v258, %v260
    %v269 = vsel %vm265, %v264, %v258
    %v270 = vlaneseq
    %v271 = vshrl.u32 %v270, 7
    %v272 = vsub.s32 7, %v271
    %v273 = vrot.slane %v49, %v272
    %v274 = vlaneseq
    %v275 = vshrl.u32 %v274, 7
    %v276 = vsub.s32 7, %v275
    %v277 = vrot.slane %v50, %v276
    %v278 = vlaneseq
    %v279 = vshrl.u32 %v278, 7
    %v280 = vsub.s32 7, %v279
    %v281 = vrot.slane %v51, %v280
    %v282 = vlaneseq
    %v283 = vshrl.u32 %v282, 7
    %v284 = vsub.s32 7, %v283
    %v285 = vrot.slane %v52, %v284
    %v286 = vmul.f32 %v268, %v273
    %v287 = vmul.f32 %v267, %v277
    %v288 = vmul.f32 %v266, %v281
    %v289 = vmul.f32 %v269, %v285
    %290 = vrot.lane.b32.xlu0 %v33, 111
    %v291 = vpop.permute.xlu0 %290
    %292 = vrot.lane.b32.xlu0 %v36, 111
    %v293 = vpop.permute.xlu0 %292
    %294 = vrot.lane.b32.xlu0 %v34, 111
    %v295 = vpop.permute.xlu0 %294
    %296 = vrot.lane.b32.xlu0 %v39, 111
    %v297 = vpop.permute.xlu0 %296
    %vm298 = vcmp.lt.s32.totalorder %v66, 111
    %v299 = vsel %vm298, %v295, %v297
    %v300 = vsel %vm298, %v293, %v295
    %v301 = vsel %vm298, %v291, %v293
    %v302 = vsel %vm298, %v297, %v291
    %v303 = vlaneseq
    %v304 = vshrl.u32 %v303, 7
    %v305 = vsub.s32 0, %v304
    %v306 = vrot.slane %v53, %v305
    %v307 = vlaneseq
    %v308 = vshrl.u32 %v307, 7
    %v309 = vsub.s32 0, %v308
    %v310 = vrot.slane %v54, %v309
    %v311 = vlaneseq
    %v312 = vshrl.u32 %v311, 7
    %v313 = vsub.s32 0, %v312
    %v314 = vrot.slane %v55, %v313
    %v315 = vlaneseq
    %v316 = vshrl.u32 %v315, 7
    %v317 = vsub.s32 0, %v316
    %v318 = vrot.slane %v56, %v317
    %v319 = vmul.f32 %v301, %v306
    %v320 = vmul.f32 %v300, %v310
    %v321 = vmul.f32 %v299, %v314
    %v322 = vmul.f32 %v302, %v318
    %v327 = vrot.slane %v121, 4
    %v328 = vrot.slane %v122, 4
    %v329 = vrot.slane %v123, 4
    %v330 = vrot.slane %v124, 4
    %v339 = vrot.slane %v187, 4
    %v340 = vrot.slane %v188, 4
    %v341 = vrot.slane %v189, 4
    %v342 = vrot.slane %v190, 4
    %v351 = vrot.slane %v220, 4
    %v352 = vrot.slane %v221, 4
    %v353 = vrot.slane %v222, 4
    %v354 = vrot.slane %v223, 4
    %v363 = vrot.slane %v286, 4
    %v364 = vrot.slane %v287, 4
    %v365 = vrot.slane %v288, 4
    %v366 = vrot.slane %v289, 4
    %vm371 = vcmask 1043456
    %v372 = vsel %vm371, %v88, %v327
    %v373 = vsel %vm371, %v89, %v328
    %v374 = vsel %vm371, %v90, %v329
    %v375 = vsel %vm371, %v91, %v330
    %v376 = vsel %vm371, %v154, %v339
    %v377 = vsel %vm371, %v155, %v340
    %v378 = vsel %vm371, %v156, %v341
    %v379 = vsel %vm371, %v157, %v342
    %v380 = vsel %vm371, %v33, %v351
    %v381 = vsel %vm371, %v36, %v352
    %v382 = vsel %vm371, %v34, %v353
    %v383 = vsel %vm371, %v39, %v354
    %v384 = vsel %vm371, %v253, %v363
    %v385 = vsel %vm371, %v254, %v364
    %v386 = vsel %vm371, %v255, %v365
    %v387 = vsel %vm371, %v256, %v366
    %389 = vset.pattern.permute.xlu0 0
    %390 = vperm.xlu0 %389, %v45
    %v391 = vpop.permute.xlu0 %390
    %vm393 = vcmask 293888
    %v395 = vsel %vm393, %v41, 0
    %v398 = vsel %vm371, %v319, 0
    %v401 = vsel %vm371, %v320, 0
    %v404 = vsel %vm371, %v321, 0
    %v407 = vsel %vm371, %v322, 0
    %409 = vmatprep.subr.mxu0 %v373
    %410 = vmatpush1.msra.mxu0 %v372
    %411 = vmatprep.subr.mxu0 %v377
    %412 = vmatpush1.msra.mxu0 %v376
    %413 = vmatprep.subr.mxu0 %v381
    %414 = vmatpush1.msra.mxu0 %v380
    %415 = vmatprep.subr.mxu0 %v385
    %416 = vmatpush1.msra.mxu0 %v384
    %417 = vmatprep.subr.mxu0 %v401
    %418 = vmatpush1.msra.mxu0 %v398
    %419 = vmatprep.subr.mxu0 0.0
    %420 = vmatpush1.msra.mxu0 0.0
    %421 = vmatprep.subr.mxu0 0.0
    %422 = vmatpush1.msra.mxu0 0.0
    %423 = vmatprep.subr.mxu0 0.0
    %424 = vmatpush1.msra.mxu0 0.0
    %425 = vmatprep.subr.mxu0 0.0
    %426 = vmatpush1.msra.mxu0 0.0
    %427 = vmatprep.subr.mxu0 0.0
    %428 = vmatpush1.msra.mxu0 0.0
    %429 = vmatprep.subr.mxu0 0.0
    %430 = vmatpush1.msra.mxu0 0.0
    %431 = vmatprep.subr.mxu0 0.0
    %432 = vmatpush1.msra.mxu0 0.0
    %433 = vmatprep.subr.mxu0 0.0
    %434 = vmatpush1.msra.mxu0 0.0
    %435 = vmatprep.subr.mxu0 0.0
    %436 = vmatpush1.msra.mxu0 0.0
    %437 = vmatprep.subr.mxu0 0.0
    %438 = vmatpush1.msra.mxu0 0.0
    %439 = vmatprep.subr.mxu0 0.0
    %440 = vmatpush1.msra.mxu0 0.0
    %441 = vmatprep.subr.mxu0 0.0
    %442 = vmatpush1.msra.mxu0 0.0
    %443 = vmatprep.subr.mxu0 0.0
    %444 = vmatpush1.msra.mxu0 0.0
    %445 = vmatprep.subr.mxu0 0.0
    %446 = vmatpush1.msra.mxu0 0.0
    %447 = vmatprep.subr.mxu0 0.0
    %448 = vmatpush1.msra.mxu0 0.0
    %449 = vmatprep.subr.mxu0 0.0
    %450 = vmatpush1.msra.mxu0 0.0
    %451 = vmatprep.subr.mxu0 0.0
    %452 = vmatpush1.msra.mxu0 0.0
    %453 = vmatprep.subr.mxu0 0.0
    %454 = vmatpush1.msra.mxu0 0.0
    %455 = vmatprep.subr.mxu0 0.0
    %456 = vmatpush1.msra.mxu0 0.0
    %457 = vmatprep.subr.mxu0 0.0
    %458 = vmatpush1.msra.mxu0 0.0
    %459 = vmatprep.subr.mxu0 0.0
    %460 = vmatpush1.msra.mxu0 0.0
    %461 = vmatprep.subr.mxu0 0.0
    %462 = vmatpush1.msra.mxu0 0.0
    %463 = vmatprep.subr.mxu0 0.0
    %464 = vmatpush1.msra.mxu0 0.0
    %465 = vmatprep.subr.mxu0 0.0
    %466 = vmatpush1.msra.mxu0 0.0
    %467 = vmatprep.subr.mxu0 0.0
    %468 = vmatpush1.msra.mxu0 0.0
    %469 = vmatprep.subr.mxu0 0.0
    %470 = vmatpush1.msra.mxu0 0.0
    %471 = vmatprep.subr.mxu0 0.0
    %472 = vmatpush1.msra.mxu0 0.0
    %473 = vmatprep.mubr.f32.mxu0 0.0
    %474 = vmatmul.mubr.f32.gmra.mrb[0].mxu0 %v395
    %v475 = vpop.f32.mrb[0].mxu0
    %v476 = vadd.f32 %v391, %v475
    %v477 = vpop.f32.mrb[0].mxu0
    %v478 = vadd.f32 %v391, %v477
    %479 = vdwg.mxu0
    %480 = vmatprep.subr.mxu0 %v375
    %481 = vmatpush1.msra.mxu0 %v374
    %482 = vmatprep.subr.mxu0 %v379
    %483 = vmatpush1.msra.mxu0 %v378
    %484 = vmatprep.subr.mxu0 %v383
    %485 = vmatpush1.msra.mxu0 %v382
    %486 = vmatprep.subr.mxu0 %v387
    %487 = vmatpush1.msra.mxu0 %v386
    %488 = vmatprep.subr.mxu0 %v407
    %489 = vmatpush1.msra.mxu0 %v404
    %490 = vmatprep.subr.mxu0 0.0
    %491 = vmatpush1.msra.mxu0 0.0
    %492 = vmatprep.subr.mxu0 0.0
    %493 = vmatpush1.msra.mxu0 0.0
    %494 = vmatprep.subr.mxu0 0.0
    %495 = vmatpush1.msra.mxu0 0.0
    %496 = vmatprep.subr.mxu0 0.0
    %497 = vmatpush1.msra.mxu0 0.0
    %498 = vmatprep.subr.mxu0 0.0
    %499 = vmatpush1.msra.mxu0 0.0
    %500 = vmatprep.subr.mxu0 0.0
    %501 = vmatpush1.msra.mxu0 0.0
    %502 = vmatprep.subr.mxu0 0.0
    %503 = vmatpush1.msra.mxu0 0.0
    %504 = vmatprep.subr.mxu0 0.0
    %505 = vmatpush1.msra.mxu0 0.0
    %506 = vmatprep.subr.mxu0 0.0
    %507 = vmatpush1.msra.mxu0 0.0
    %508 = vmatprep.subr.mxu0 0.0
    %509 = vmatpush1.msra.mxu0 0.0
    %510 = vmatprep.subr.mxu0 0.0
    %511 = vmatpush1.msra.mxu0 0.0
    %512 = vmatprep.subr.mxu0 0.0
    %513 = vmatpush1.msra.mxu0 0.0
    %514 = vmatprep.subr.mxu0 0.0
    %515 = vmatpush1.msra.mxu0 0.0
    %516 = vmatprep.subr.mxu0 0.0
    %517 = vmatpush1.msra.mxu0 0.0
    %518 = vmatprep.subr.mxu0 0.0
    %519 = vmatpush1.msra.mxu0 0.0
    %520 = vmatprep.subr.mxu0 0.0
    %521 = vmatpush1.msra.mxu0 0.0
    %522 = vmatprep.subr.mxu0 0.0
    %523 = vmatpush1.msra.mxu0 0.0
    %524 = vmatprep.subr.mxu0 0.0
    %525 = vmatpush1.msra.mxu0 0.0
    %526 = vmatprep.subr.mxu0 0.0
    %527 = vmatpush1.msra.mxu0 0.0
    %528 = vmatprep.subr.mxu0 0.0
    %529 = vmatpush1.msra.mxu0 0.0
    %530 = vmatprep.subr.mxu0 0.0
    %531 = vmatpush1.msra.mxu0 0.0
    %532 = vmatprep.subr.mxu0 0.0
    %533 = vmatpush1.msra.mxu0 0.0
    %534 = vmatprep.subr.mxu0 0.0
    %535 = vmatpush1.msra.mxu0 0.0
    %536 = vmatprep.subr.mxu0 0.0
    %537 = vmatpush1.msra.mxu0 0.0
    %538 = vmatprep.subr.mxu0 0.0
    %539 = vmatpush1.msra.mxu0 0.0
    %540 = vmatprep.subr.mxu0 0.0
    %541 = vmatpush1.msra.mxu0 0.0
    %542 = vmatprep.subr.mxu0 0.0
    %543 = vmatpush1.msra.mxu0 0.0
    %544 = vmatprep.mubr.f32.mxu0 0.0
    %545 = vmatmul.mubr.f32.gmra.mrb[0].mxu0 %v395
    %v546 = vpop.f32.mrb[0].mxu0
    %v547 = vadd.f32 %v391, %v546
    %v548 = vpop.f32.mrb[0].mxu0
    %v549 = vadd.f32 %v391, %v548
    %550 = vdwg.mxu0
    %s551 = sld [smem:[#allocation2]]
    %vm552 = vcmp.ge.f32.partialorder %v476, 0.0
    %vm553 = vcmp.ge.f32.partialorder %v478, 0.0
    %vm554 = vcmp.ge.f32.partialorder %v547, 0.0
    %vm555 = vcmp.ge.f32.partialorder %v549, 0.0
    %v556 = vstv %s551
    %v557 = vmul.f32 %v556, %v476
    %v558 = vmul.f32 %v556, %v478
    %v559 = vmul.f32 %v556, %v547
    %v560 = vmul.f32 %v556, %v549
    %v561 = vsel %vm552, %v476, %v557
    %v562 = vsel %vm553, %v478, %v558
    %v563 = vsel %vm554, %v547, %v559
    %v564 = vsel %vm555, %v549, %v560
    %565 = vrot.lane.b32.xlu0 %v561, 17
    %v566 = vpop.permute.xlu0 %565
    %567 = vrot.lane.b32.xlu0 %v562, 17
    %v568 = vpop.permute.xlu0 %567
    %569 = vrot.lane.b32.xlu0 %v563, 17
    %v570 = vpop.permute.xlu0 %569
    %571 = vrot.lane.b32.xlu0 %v564, 17
    %v572 = vpop.permute.xlu0 %571
    %v573 = vsel %vm67, %v570, %v572
    %v574 = vsel %vm67, %v568, %v570
    %v575 = vsel %vm67, %v566, %v568
    %v576 = vsel %vm67, %v572, %v566
    %v577 = vmul.f32 %v576, %v75
    %v578 = vmul.f32 %v575, %v79
    %v579 = vmul.f32 %v574, %v83
    %v580 = vmul.f32 %v573, %v87
    %581 = vrot.lane.b32.xlu0 %v561, 16
    %v582 = vpop.permute.xlu0 %581
    %583 = vrot.lane.b32.xlu0 %v562, 16
    %v584 = vpop.permute.xlu0 %583
    %585 = vrot.lane.b32.xlu0 %v563, 16
    %v586 = vpop.permute.xlu0 %585
    %587 = vrot.lane.b32.xlu0 %v564, 16
    %v588 = vpop.permute.xlu0 %587
    %v589 = vsel %vm100, %v586, %v588
    %v590 = vsel %vm100, %v584, %v586
    %v591 = vsel %vm100, %v582, %v584
    %v592 = vsel %vm100, %v588, %v582
    %v593 = vmul.f32 %v592, %v108
    %v594 = vmul.f32 %v591, %v112
    %v595 = vmul.f32 %v590, %v116
    %v596 = vmul.f32 %v589, %v120
    %597 = vrot.lane.b32.xlu0 %v561, 15
    %v598 = vpop.permute.xlu0 %597
    %599 = vrot.lane.b32.xlu0 %v562, 15
    %v600 = vpop.permute.xlu0 %599
    %601 = vrot.lane.b32.xlu0 %v563, 15
    %v602 = vpop.permute.xlu0 %601
    %603 = vrot.lane.b32.xlu0 %v564, 15
    %v604 = vpop.permute.xlu0 %603
    %v605 = vsel %vm133, %v602, %v604
    %v606 = vsel %vm133, %v600, %v602
    %v607 = vsel %vm133, %v598, %v600
    %v608 = vsel %vm133, %v604, %v598
    %v609 = vmul.f32 %v608, %v141
    %v610 = vmul.f32 %v607, %v145
    %v611 = vmul.f32 %v606, %v149
    %v612 = vmul.f32 %v605, %v153
    %613 = vrot.lane.b32.xlu0 %v561, 1
    %v614 = vpop.permute.xlu0 %613
    %615 = vrot.lane.b32.xlu0 %v562, 1
    %v616 = vpop.permute.xlu0 %615
    %617 = vrot.lane.b32.xlu0 %v563, 1
    %v618 = vpop.permute.xlu0 %617
    %619 = vrot.lane.b32.xlu0 %v564, 1
    %v620 = vpop.permute.xlu0 %619
    %v621 = vsel %vm166, %v618, %v620
    %v622 = vsel %vm166, %v616, %v618
    %v623 = vsel %vm166, %v614, %v616
    %v624 = vsel %vm166, %v620, %v614
    %v625 = vmul.f32 %v624, %v174
    %v626 = vmul.f32 %v623, %v178
    %v627 = vmul.f32 %v622, %v182
    %v628 = vmul.f32 %v621, %v186
    %629 = vrot.lane.b32.xlu0 %v561, 127
    %v630 = vpop.permute.xlu0 %629
    %631 = vrot.lane.b32.xlu0 %v562, 127
    %v632 = vpop.permute.xlu0 %631
    %633 = vrot.lane.b32.xlu0 %v563, 127
    %v634 = vpop.permute.xlu0 %633
    %635 = vrot.lane.b32.xlu0 %v564, 127
    %v636 = vpop.permute.xlu0 %635
    %v637 = vsel %vm199, %v634, %v636
    %v638 = vsel %vm199, %v632, %v634
    %v639 = vsel %vm199, %v630, %v632
    %v640 = vsel %vm199, %v636, %v630
    %v641 = vmul.f32 %v639, %v207
    %v642 = vmul.f32 %v638, %v211
    %v643 = vmul.f32 %v637, %v215
    %v644 = vmul.f32 %v640, %v219
    %645 = vrot.lane.b32.xlu0 %v561, 113
    %v646 = vpop.permute.xlu0 %645
    %647 = vrot.lane.b32.xlu0 %v562, 113
    %v648 = vpop.permute.xlu0 %647
    %649 = vrot.lane.b32.xlu0 %v563, 113
    %v650 = vpop.permute.xlu0 %649
    %651 = vrot.lane.b32.xlu0 %v564, 113
    %v652 = vpop.permute.xlu0 %651
    %v653 = vsel %vm232, %v650, %v652
    %v654 = vsel %vm232, %v648, %v650
    %v655 = vsel %vm232, %v646, %v648
    %v656 = vsel %vm232, %v652, %v646
    %v657 = vmul.f32 %v655, %v240
    %v658 = vmul.f32 %v654, %v244
    %v659 = vmul.f32 %v653, %v248
    %v660 = vmul.f32 %v656, %v252
    %661 = vrot.lane.b32.xlu0 %v561, 112
    %v662 = vpop.permute.xlu0 %661
    %663 = vrot.lane.b32.xlu0 %v562, 112
    %v664 = vpop.permute.xlu0 %663
    %665 = vrot.lane.b32.xlu0 %v563, 112
    %v666 = vpop.permute.xlu0 %665
    %667 = vrot.lane.b32.xlu0 %v564, 112
    %v668 = vpop.permute.xlu0 %667
    %v669 = vsel %vm265, %v666, %v668
    %v670 = vsel %vm265, %v664, %v666
    %v671 = vsel %vm265, %v662, %v664
    %v672 = vsel %vm265, %v668, %v662
    %v673 = vmul.f32 %v671, %v273
    %v674 = vmul.f32 %v670, %v277
    %v675 = vmul.f32 %v669, %v281
    %v676 = vmul.f32 %v672, %v285
    %677 = vrot.lane.b32.xlu0 %v561, 111
    %v678 = vpop.permute.xlu0 %677
    %679 = vrot.lane.b32.xlu0 %v562, 111
    %v680 = vpop.permute.xlu0 %679
    %681 = vrot.lane.b32.xlu0 %v563, 111
    %v682 = vpop.permute.xlu0 %681
    %683 = vrot.lane.b32.xlu0 %v564, 111
    %v684 = vpop.permute.xlu0 %683
    %v685 = vsel %vm298, %v682, %v684
    %v686 = vsel %vm298, %v680, %v682
    %v687 = vsel %vm298, %v678, %v680
    %v688 = vsel %vm298, %v684, %v678
    %v689 = vmul.f32 %v687, %v306
    %v690 = vmul.f32 %v686, %v310
    %v691 = vmul.f32 %v685, %v314
    %v692 = vmul.f32 %v688, %v318
    %v697 = vrot.slane %v593, 4
    %v698 = vrot.slane %v594, 4
    %v699 = vrot.slane %v595, 4
    %v700 = vrot.slane %v596, 4
    %v709 = vrot.slane %v625, 4
    %v710 = vrot.slane %v626, 4
    %v711 = vrot.slane %v627, 4
    %v712 = vrot.slane %v628, 4
    %v721 = vrot.slane %v641, 4
    %v722 = vrot.slane %v642, 4
    %v723 = vrot.slane %v643, 4
    %v724 = vrot.slane %v644, 4
    %v733 = vrot.slane %v673, 4
    %v734 = vrot.slane %v674, 4
    %v735 = vrot.slane %v675, 4
    %v736 = vrot.slane %v676, 4
    %v741 = vsel %vm371, %v577, %v697
    %v742 = vsel %vm371, %v578, %v698
    %v743 = vsel %vm371, %v579, %v699
    %v744 = vsel %vm371, %v580, %v700
    %v745 = vsel %vm371, %v609, %v709
    %v746 = vsel %vm371, %v610, %v710
    %v747 = vsel %vm371, %v611, %v711
    %v748 = vsel %vm371, %v612, %v712
    %v749 = vsel %vm371, %v561, %v721
    %v750 = vsel %vm371, %v562, %v722
    %v751 = vsel %vm371, %v563, %v723
    %v752 = vsel %vm371, %v564, %v724
    %v753 = vsel %vm371, %v657, %v733
    %v754 = vsel %vm371, %v658, %v734
    %v755 = vsel %vm371, %v659, %v735
    %v756 = vsel %vm371, %v660, %v736
    %758 = vset.pattern.permute.xlu0 0
    %759 = vperm.xlu0 %758, %v46
    %v760 = vpop.permute.xlu0 %759
    %v763 = vsel %vm393, %v42, 0
    %v766 = vsel %vm371, %v689, 0
    %v769 = vsel %vm371, %v690, 0
    %v772 = vsel %vm371, %v691, 0
    %v775 = vsel %vm371, %v692, 0
    %777 = vmatprep.subr.mxu0 %v742
    %778 = vmatpush1.msra.mxu0 %v741
    %779 = vmatprep.subr.mxu0 %v746
    %780 = vmatpush1.msra.mxu0 %v745
    %781 = vmatprep.subr.mxu0 %v750
    %782 = vmatpush1.msra.mxu0 %v749
    %783 = vmatprep.subr.mxu0 %v754
    %784 = vmatpush1.msra.mxu0 %v753
    %785 = vmatprep.subr.mxu0 %v769
    %786 = vmatpush1.msra.mxu0 %v766
    %787 = vmatprep.subr.mxu0 0.0
    %788 = vmatpush1.msra.mxu0 0.0
    %789 = vmatprep.subr.mxu0 0.0
    %790 = vmatpush1.msra.mxu0 0.0
    %791 = vmatprep.subr.mxu0 0.0
    %792 = vmatpush1.msra.mxu0 0.0
    %793 = vmatprep.subr.mxu0 0.0
    %794 = vmatpush1.msra.mxu0 0.0
    %795 = vmatprep.subr.mxu0 0.0
    %796 = vmatpush1.msra.mxu0 0.0
    %797 = vmatprep.subr.mxu0 0.0
    %798 = vmatpush1.msra.mxu0 0.0
    %799 = vmatprep.subr.mxu0 0.0
    %800 = vmatpush1.msra.mxu0 0.0
    %801 = vmatprep.subr.mxu0 0.0
    %802 = vmatpush1.msra.mxu0 0.0
    %803 = vmatprep.subr.mxu0 0.0
    %804 = vmatpush1.msra.mxu0 0.0
    %805 = vmatprep.subr.mxu0 0.0
    %806 = vmatpush1.msra.mxu0 0.0
    %807 = vmatprep.subr.mxu0 0.0
    %808 = vmatpush1.msra.mxu0 0.0
    %809 = vmatprep.subr.mxu0 0.0
    %810 = vmatpush1.msra.mxu0 0.0
    %811 = vmatprep.subr.mxu0 0.0
    %812 = vmatpush1.msra.mxu0 0.0
    %813 = vmatprep.subr.mxu0 0.0
    %814 = vmatpush1.msra.mxu0 0.0
    %815 = vmatprep.subr.mxu0 0.0
    %816 = vmatpush1.msra.mxu0 0.0
    %817 = vmatprep.subr.mxu0 0.0
    %818 = vmatpush1.msra.mxu0 0.0
    %819 = vmatprep.subr.mxu0 0.0
    %820 = vmatpush1.msra.mxu0 0.0
    %821 = vmatprep.subr.mxu0 0.0
    %822 = vmatpush1.msra.mxu0 0.0
    %823 = vmatprep.subr.mxu0 0.0
    %824 = vmatpush1.msra.mxu0 0.0
    %825 = vmatprep.subr.mxu0 0.0
    %826 = vmatpush1.msra.mxu0 0.0
    %827 = vmatprep.subr.mxu0 0.0
    %828 = vmatpush1.msra.mxu0 0.0
    %829 = vmatprep.subr.mxu0 0.0
    %830 = vmatpush1.msra.mxu0 0.0
    %831 = vmatprep.subr.mxu0 0.0
    %832 = vmatpush1.msra.mxu0 0.0
    %833 = vmatprep.subr.mxu0 0.0
    %834 = vmatpush1.msra.mxu0 0.0
    %835 = vmatprep.subr.mxu0 0.0
    %836 = vmatpush1.msra.mxu0 0.0
    %837 = vmatprep.subr.mxu0 0.0
    %838 = vmatpush1.msra.mxu0 0.0
    %839 = vmatprep.subr.mxu0 0.0
    %840 = vmatpush1.msra.mxu0 0.0
    %841 = vmatprep.mubr.f32.mxu0 0.0
    %842 = vmatmul.mubr.f32.gmra.mrb[0].mxu0 %v763
    %v843 = vpop.f32.mrb[0].mxu0
    %v844 = vadd.f32 %v760, %v843
    %v845 = vpop.f32.mrb[0].mxu0
    %v846 = vadd.f32 %v760, %v845
    %847 = vdwg.mxu0
    %848 = vmatprep.subr.mxu0 %v744
    %849 = vmatpush1.msra.mxu0 %v743
    %850 = vmatprep.subr.mxu0 %v748
    %851 = vmatpush1.msra.mxu0 %v747
    %852 = vmatprep.subr.mxu0 %v752
    %853 = vmatpush1.msra.mxu0 %v751
    %854 = vmatprep.subr.mxu0 %v756
    %855 = vmatpush1.msra.mxu0 %v755
    %856 = vmatprep.subr.mxu0 %v775
    %857 = vmatpush1.msra.mxu0 %v772
    %858 = vmatprep.subr.mxu0 0.0
    %859 = vmatpush1.msra.mxu0 0.0
    %860 = vmatprep.subr.mxu0 0.0
    %861 = vmatpush1.msra.mxu0 0.0
    %862 = vmatprep.subr.mxu0 0.0
    %863 = vmatpush1.msra.mxu0 0.0
    %864 = vmatprep.subr.mxu0 0.0
    %865 = vmatpush1.msra.mxu0 0.0
    %866 = vmatprep.subr.mxu0 0.0
    %867 = vmatpush1.msra.mxu0 0.0
    %868 = vmatprep.subr.mxu0 0.0
    %869 = vmatpush1.msra.mxu0 0.0
    %870 = vmatprep.subr.mxu0 0.0
    %871 = vmatpush1.msra.mxu0 0.0
    %872 = vmatprep.subr.mxu0 0.0
    %873 = vmatpush1.msra.mxu0 0.0
    %874 = vmatprep.subr.mxu0 0.0
    %875 = vmatpush1.msra.mxu0 0.0
    %876 = vmatprep.subr.mxu0 0.0
    %877 = vmatpush1.msra.mxu0 0.0
    %878 = vmatprep.subr.mxu0 0.0
    %879 = vmatpush1.msra.mxu0 0.0
    %880 = vmatprep.subr.mxu0 0.0
    %881 = vmatpush1.msra.mxu0 0.0
    %882 = vmatprep.subr.mxu0 0.0
    %883 = vmatpush1.msra.mxu0 0.0
    %884 = vmatprep.subr.mxu0 0.0
    %885 = vmatpush1.msra.mxu0 0.0
    %886 = vmatprep.subr.mxu0 0.0
    %887 = vmatpush1.msra.mxu0 0.0
    %888 = vmatprep.subr.mxu0 0.0
    %889 = vmatpush1.msra.mxu0 0.0
    %890 = vmatprep.subr.mxu0 0.0
    %891 = vmatpush1.msra.mxu0 0.0
    %892 = vmatprep.subr.mxu0 0.0
    %893 = vmatpush1.msra.mxu0 0.0
    %894 = vmatprep.subr.mxu0 0.0
    %895 = vmatpush1.msra.mxu0 0.0
    %896 = vmatprep.subr.mxu0 0.0
    %897 = vmatpush1.msra.mxu0 0.0
    %898 = vmatprep.subr.mxu0 0.0
    %899 = vmatpush1.msra.mxu0 0.0
    %900 = vmatprep.subr.mxu0 0.0
    %901 = vmatpush1.msra.mxu0 0.0
    %902 = vmatprep.subr.mxu0 0.0
    %903 = vmatpush1.msra.mxu0 0.0
    %904 = vmatprep.subr.mxu0 0.0
    %905 = vmatpush1.msra.mxu0 0.0
    %906 = vmatprep.subr.mxu0 0.0
    %907 = vmatpush1.msra.mxu0 0.0
    %908 = vmatprep.subr.mxu0 0.0
    %909 = vmatpush1.msra.mxu0 0.0
    %910 = vmatprep.subr.mxu0 0.0
    %911 = vmatpush1.msra.mxu0 0.0
    %912 = vmatprep.mubr.f32.mxu0 0.0
    %913 = vmatmul.mubr.f32.gmra.mrb[0].mxu0 %v763
    %v914 = vpop.f32.mrb[0].mxu0
    %v915 = vadd.f32 %v760, %v914
    %v916 = vpop.f32.mrb[0].mxu0
    %v917 = vadd.f32 %v760, %v916
    %918 = vdwg.mxu0
    %s919 = sld [smem:[#allocation2 + $0x1]]
    %vm920 = vcmp.ge.f32.partialorder %v844, 0.0
    %vm921 = vcmp.ge.f32.partialorder %v846, 0.0
    %vm922 = vcmp.ge.f32.partialorder %v915, 0.0
    %vm923 = vcmp.ge.f32.partialorder %v917, 0.0
    %v924 = vstv %s919
    %v925 = vmul.f32 %v924, %v844
    %v926 = vmul.f32 %v924, %v846
    %v927 = vmul.f32 %v924, %v915
    %v928 = vmul.f32 %v924, %v917
    %v929 = vsel %vm920, %v844, %v925
    %v930 = vsel %vm921, %v846, %v926
    %v931 = vsel %vm922, %v915, %v927
    %v932 = vsel %vm923, %v917, %v928
    %s933 = sld [smem:[#allocation2 + $0x2]]
    %vm934 = vcmp.ge.f32.partialorder %v929, 0.0
    %vm935 = vcmp.ge.f32.partialorder %v930, 0.0
    %vm936 = vcmp.ge.f32.partialorder %v931, 0.0
    %vm937 = vcmp.ge.f32.partialorder %v932, 0.0
    %v938 = vstv %s933
    %v939 = vmul.f32 %v938, %v929
    %v940 = vmul.f32 %v938, %v930
    %v941 = vmul.f32 %v938, %v931
    %v942 = vmul.f32 %v938, %v932
    %v943 = vsel %vm934, %v929, %v939
    %v944 = vsel %vm935, %v930, %v940
    %v945 = vsel %vm936, %v931, %v941
    %v946 = vsel %vm937, %v932, %v942
    %v947 = vadd.f32 %v943, %v33
    %v948 = vadd.f32 %v944, %v36
    %v949 = vadd.f32 %v945, %v34
    %v950 = vadd.f32 %v946, %v39
    %951 = vrot.lane.b32.xlu0 %v947, 17
    %v952 = vpop.permute.xlu0 %951
    %953 = vrot.lane.b32.xlu0 %v948, 17
    %v954 = vpop.permute.xlu0 %953
    %955 = vrot.lane.b32.xlu0 %v949, 17
    %v956 = vpop.permute.xlu0 %955
    %957 = vrot.lane.b32.xlu0 %v950, 17
    %v958 = vpop.permute.xlu0 %957
    %v959 = vsel %vm67, %v956, %v958
    %v960 = vsel %vm67, %v954, %v956
    %v961 = vsel %vm67, %v952, %v954
    %v962 = vsel %vm67, %v958, %v952
    %v963 = vmul.f32 %v962, %v75
    %v964 = vmul.f32 %v961, %v79
    %v965 = vmul.f32 %v960, %v83
    %v966 = vmul.f32 %v959, %v87
    %967 = vrot.lane.b32.xlu0 %v947, 16
    %v968 = vpop.permute.xlu0 %967
    %969 = vrot.lane.b32.xlu0 %v948, 16
    %v970 = vpop.permute.xlu0 %969
    %971 = vrot.lane.b32.xlu0 %v949, 16
    %v972 = vpop.permute.xlu0 %971
    %973 = vrot.lane.b32.xlu0 %v950, 16
    %v974 = vpop.permute.xlu0 %973
    %v975 = vsel %vm100, %v972, %v974
    %v976 = vsel %vm100, %v970, %v972
    %v977 = vsel %vm100, %v968, %v970
    %v978 = vsel %vm100, %v974, %v968
    %v979 = vmul.f32 %v978, %v108
    %v980 = vmul.f32 %v977, %v112
    %v981 = vmul.f32 %v976, %v116
    %v982 = vmul.f32 %v975, %v120
    %983 = vrot.lane.b32.xlu0 %v947, 15
    %v984 = vpop.permute.xlu0 %983
    %985 = vrot.lane.b32.xlu0 %v948, 15
    %v986 = vpop.permute.xlu0 %985
    %987 = vrot.lane.b32.xlu0 %v949, 15
    %v988 = vpop.permute.xlu0 %987
    %989 = vrot.lane.b32.xlu0 %v950, 15
    %v990 = vpop.permute.xlu0 %989
    %v991 = vsel %vm133, %v988, %v990
    %v992 = vsel %vm133, %v986, %v988
    %v993 = vsel %vm133, %v984, %v986
    %v994 = vsel %vm133, %v990, %v984
    %v995 = vmul.f32 %v994, %v141
    %v996 = vmul.f32 %v993, %v145
    %v997 = vmul.f32 %v992, %v149
    %v998 = vmul.f32 %v991, %v153
    %999 = vrot.lane.b32.xlu0 %v947, 1
    %v1000 = vpop.permute.xlu0 %999
    %1001 = vrot.lane.b32.xlu0 %v948, 1
    %v1002 = vpop.permute.xlu0 %1001
    %1003 = vrot.lane.b32.xlu0 %v949, 1
    %v1004 = vpop.permute.xlu0 %1003
    %1005 = vrot.lane.b32.xlu0 %v950, 1
    %v1006 = vpop.permute.xlu0 %1005
    %v1007 = vsel %vm166, %v1004, %v1006
    %v1008 = vsel %vm166, %v1002, %v1004
    %v1009 = vsel %vm166, %v1000, %v1002
    %v1010 = vsel %vm166, %v1006, %v1000
    %v1011 = vmul.f32 %v1010, %v174
    %v1012 = vmul.f32 %v1009, %v178
    %v1013 = vmul.f32 %v1008, %v182
    %v1014 = vmul.f32 %v1007, %v186
    %1015 = vrot.lane.b32.xlu0 %v947, 127
    %v1016 = vpop.permute.xlu0 %1015
    %1017 = vrot.lane.b32.xlu0 %v948, 127
    %v1018 = vpop.permute.xlu0 %1017
    %1019 = vrot.lane.b32.xlu0 %v949, 127
    %v1020 = vpop.permute.xlu0 %1019
    %1021 = vrot.lane.b32.xlu0 %v950, 127
    %v1022 = vpop.permute.xlu0 %1021
    %v1023 = vsel %vm199, %v1020, %v1022
    %v1024 = vsel %vm199, %v1018, %v1020
    %v1025 = vsel %vm199, %v1016, %v1018
    %v1026 = vsel %vm199, %v1022, %v1016
    %v1027 = vmul.f32 %v1025, %v207
    %v1028 = vmul.f32 %v1024, %v211
    %v1029 = vmul.f32 %v1023, %v215
    %v1030 = vmul.f32 %v1026, %v219
    %1031 = vrot.lane.b32.xlu0 %v947, 113
    %v1032 = vpop.permute.xlu0 %1031
    %1033 = vrot.lane.b32.xlu0 %v948, 113
    %v1034 = vpop.permute.xlu0 %1033
    %1035 = vrot.lane.b32.xlu0 %v949, 113
    %v1036 = vpop.permute.xlu0 %1035
    %1037 = vrot.lane.b32.xlu0 %v950, 113
    %v1038 = vpop.permute.xlu0 %1037
    %v1039 = vsel %vm232, %v1036, %v1038
    %v1040 = vsel %vm232, %v1034, %v1036
    %v1041 = vsel %vm232, %v1032, %v1034
    %v1042 = vsel %vm232, %v1038, %v1032
    %v1043 = vmul.f32 %v1041, %v240
    %v1044 = vmul.f32 %v1040, %v244
    %v1045 = vmul.f32 %v1039, %v248
    %v1046 = vmul.f32 %v1042, %v252
    %1047 = vrot.lane.b32.xlu0 %v947, 112
    %v1048 = vpop.permute.xlu0 %1047
    %1049 = vrot.lane.b32.xlu0 %v948, 112
    %v1050 = vpop.permute.xlu0 %1049
    %1051 = vrot.lane.b32.xlu0 %v949, 112
    %v1052 = vpop.permute.xlu0 %1051
    %1053 = vrot.lane.b32.xlu0 %v950, 112
    %v1054 = vpop.permute.xlu0 %1053
    %v1055 = vsel %vm265, %v1052, %v1054
    %v1056 = vsel %vm265, %v1050, %v1052
    %v1057 = vsel %vm265, %v1048, %v1050
    %v1058 = vsel %vm265, %v1054, %v1048
    %v1059 = vmul.f32 %v1057, %v273
    %v1060 = vmul.f32 %v1056, %v277
    %v1061 = vmul.f32 %v1055, %v281
    %v1062 = vmul.f32 %v1058, %v285
    %1063 = vrot.lane.b32.xlu0 %v947, 111
    %v1064 = vpop.permute.xlu0 %1063
    %1065 = vrot.lane.b32.xlu0 %v948, 111
    %v1066 = vpop.permute.xlu0 %1065
    %1067 = vrot.lane.b32.xlu0 %v949, 111
    %v1068 = vpop.permute.xlu0 %1067
    %1069 = vrot.lane.b32.xlu0 %v950, 111
    %v1070 = vpop.permute.xlu0 %1069
    %v1071 = vsel %vm298, %v1068, %v1070
    %v1072 = vsel %vm298, %v1066, %v1068
    %v1073 = vsel %vm298, %v1064, %v1066
    %v1074 = vsel %vm298, %v1070, %v1064
    %v1075 = vmul.f32 %v1073, %v306
    %v1076 = vmul.f32 %v1072, %v310
    %v1077 = vmul.f32 %v1071, %v314
    %v1078 = vmul.f32 %v1074, %v318
    %v1083 = vrot.slane %v979, 4
    %v1084 = vrot.slane %v980, 4
    %v1085 = vrot.slane %v981, 4
    %v1086 = vrot.slane %v982, 4
    %v1095 = vrot.slane %v1011, 4
    %v1096 = vrot.slane %v1012, 4
    %v1097 = vrot.slane %v1013, 4
    %v1098 = vrot.slane %v1014, 4
    %v1107 = vrot.slane %v1027, 4
    %v1108 = vrot.slane %v1028, 4
    %v1109 = vrot.slane %v1029, 4
    %v1110 = vrot.slane %v1030, 4
    %v1119 = vrot.slane %v1059, 4
    %v1120 = vrot.slane %v1060, 4
    %v1121 = vrot.slane %v1061, 4
    %v1122 = vrot.slane %v1062, 4
    %v1127 = vsel %vm371, %v963, %v1083
    %v1128 = vsel %vm371, %v964, %v1084
    %v1129 = vsel %vm371, %v965, %v1085
    %v1130 = vsel %vm371, %v966, %v1086
    %v1131 = vsel %vm371, %v995, %v1095
    %v1132 = vsel %vm371, %v996, %v1096
    %v1133 = vsel %vm371, %v997, %v1097
    %v1134 = vsel %vm371, %v998, %v1098
    %v1135 = vsel %vm371, %v947, %v1107
    %v1136 = vsel %vm371, %v948, %v1108
    %v1137 = vsel %vm371, %v949, %v1109
    %v1138 = vsel %vm371, %v950, %v1110
    %v1139 = vsel %vm371, %v1043, %v1119
    %v1140 = vsel %vm371, %v1044, %v1120
    %v1141 = vsel %vm371, %v1045, %v1121
    %v1142 = vsel %vm371, %v1046, %v1122
    %1144 = vset.pattern.permute.xlu0 0
    %1145 = vperm.xlu0 %1144, %v47
    %v1146 = vpop.permute.xlu0 %1145
    %v1149 = vsel %vm393, %v43, 0
    %v1152 = vsel %vm371, %v1075, 0
    %v1155 = vsel %vm371, %v1076, 0
    %v1158 = vsel %vm371, %v1077, 0
    %v1161 = vsel %vm371, %v1078, 0
    %1163 = vmatprep.subr.mxu0 %v1128
    %1164 = vmatpush1.msra.mxu0 %v1127
    %1165 = vmatprep.subr.mxu0 %v1132
    %1166 = vmatpush1.msra.mxu0 %v1131
    %1167 = vmatprep.subr.mxu0 %v1136
    %1168 = vmatpush1.msra.mxu0 %v1135
    %1169 = vmatprep.subr.mxu0 %v1140
    %1170 = vmatpush1.msra.mxu0 %v1139
    %1171 = vmatprep.subr.mxu0 %v1155
    %1172 = vmatpush1.msra.mxu0 %v1152
    %1173 = vmatprep.subr.mxu0 0.0
    %1174 = vmatpush1.msra.mxu0 0.0
    %1175 = vmatprep.subr.mxu0 0.0
    %1176 = vmatpush1.msra.mxu0 0.0
    %1177 = vmatprep.subr.mxu0 0.0
    %1178 = vmatpush1.msra.mxu0 0.0
    %1179 = vmatprep.subr.mxu0 0.0
    %1180 = vmatpush1.msra.mxu0 0.0
    %1181 = vmatprep.subr.mxu0 0.0
    %1182 = vmatpush1.msra.mxu0 0.0
    %1183 = vmatprep.subr.mxu0 0.0
    %1184 = vmatpush1.msra.mxu0 0.0
    %1185 = vmatprep.subr.mxu0 0.0
    %1186 = vmatpush1.msra.mxu0 0.0
    %1187 = vmatprep.subr.mxu0 0.0
    %1188 = vmatpush1.msra.mxu0 0.0
    %1189 = vmatprep.subr.mxu0 0.0
    %1190 = vmatpush1.msra.mxu0 0.0
    %1191 = vmatprep.subr.mxu0 0.0
    %1192 = vmatpush1.msra.mxu0 0.0
    %1193 = vmatprep.subr.mxu0 0.0
    %1194 = vmatpush1.msra.mxu0 0.0
    %1195 = vmatprep.subr.mxu0 0.0
    %1196 = vmatpush1.msra.mxu0 0.0
    %1197 = vmatprep.subr.mxu0 0.0
    %1198 = vmatpush1.msra.mxu0 0.0
    %1199 = vmatprep.subr.mxu0 0.0
    %1200 = vmatpush1.msra.mxu0 0.0
    %1201 = vmatprep.subr.mxu0 0.0
    %1202 = vmatpush1.msra.mxu0 0.0
    %1203 = vmatprep.subr.mxu0 0.0
    %1204 = vmatpush1.msra.mxu0 0.0
    %1205 = vmatprep.subr.mxu0 0.0
    %1206 = vmatpush1.msra.mxu0 0.0
    %1207 = vmatprep.subr.mxu0 0.0
    %1208 = vmatpush1.msra.mxu0 0.0
    %1209 = vmatprep.subr.mxu0 0.0
    %1210 = vmatpush1.msra.mxu0 0.0
    %1211 = vmatprep.subr.mxu0 0.0
    %1212 = vmatpush1.msra.mxu0 0.0
    %1213 = vmatprep.subr.mxu0 0.0
    %1214 = vmatpush1.msra.mxu0 0.0
    %1215 = vmatprep.subr.mxu0 0.0
    %1216 = vmatpush1.msra.mxu0 0.0
    %1217 = vmatprep.subr.mxu0 0.0
    %1218 = vmatpush1.msra.mxu0 0.0
    %1219 = vmatprep.subr.mxu0 0.0
    %1220 = vmatpush1.msra.mxu0 0.0
    %1221 = vmatprep.subr.mxu0 0.0
    %1222 = vmatpush1.msra.mxu0 0.0
    %1223 = vmatprep.subr.mxu0 0.0
    %1224 = vmatpush1.msra.mxu0 0.0
    %1225 = vmatprep.subr.mxu0 0.0
    %1226 = vmatpush1.msra.mxu0 0.0
    %1227 = vmatprep.mubr.f32.mxu0 0.0
    %1228 = vmatmul.mubr.f32.gmra.mrb[0].mxu0 %v1149
    %v1229 = vpop.f32.mrb[0].mxu0
    %v1230 = vadd.f32 %v1146, %v1229
    %v1231 = vpop.f32.mrb[0].mxu0
    %v1232 = vadd.f32 %v1146, %v1231
    %1233 = vdwg.mxu0
    %1234 = vmatprep.subr.mxu0 %v1130
    %1235 = vmatpush1.msra.mxu0 %v1129
    %1236 = vmatprep.subr.mxu0 %v1134
    %1237 = vmatpush1.msra.mxu0 %v1133
    %1238 = vmatprep.subr.mxu0 %v1138
    %1239 = vmatpush1.msra.mxu0 %v1137
    %1240 = vmatprep.subr.mxu0 %v1142
    %1241 = vmatpush1.msra.mxu0 %v1141
    %1242 = vmatprep.subr.mxu0 %v1161
    %1243 = vmatpush1.msra.mxu0 %v1158
    %1244 = vmatprep.subr.mxu0 0.0
    %1245 = vmatpush1.msra.mxu0 0.0
    %1246 = vmatprep.subr.mxu0 0.0
    %1247 = vmatpush1.msra.mxu0 0.0
    %1248 = vmatprep.subr.mxu0 0.0
    %1249 = vmatpush1.msra.mxu0 0.0
    %1250 = vmatprep.subr.mxu0 0.0
    %1251 = vmatpush1.msra.mxu0 0.0
    %1252 = vmatprep.subr.mxu0 0.0
    %1253 = vmatpush1.msra.mxu0 0.0
    %1254 = vmatprep.subr.mxu0 0.0
    %1255 = vmatpush1.msra.mxu0 0.0
    %1256 = vmatprep.subr.mxu0 0.0
    %1257 = vmatpush1.msra.mxu0 0.0
    %1258 = vmatprep.subr.mxu0 0.0
    %1259 = vmatpush1.msra.mxu0 0.0
    %1260 = vmatprep.subr.mxu0 0.0
    %1261 = vmatpush1.msra.mxu0 0.0
    %1262 = vmatprep.subr.mxu0 0.0
    %1263 = vmatpush1.msra.mxu0 0.0
    %1264 = vmatprep.subr.mxu0 0.0
    %1265 = vmatpush1.msra.mxu0 0.0
    %1266 = vmatprep.subr.mxu0 0.0
    %1267 = vmatpush1.msra.mxu0 0.0
    %1268 = vmatprep.subr.mxu0 0.0
    %1269 = vmatpush1.msra.mxu0 0.0
    %1270 = vmatprep.subr.mxu0 0.0
    %1271 = vmatpush1.msra.mxu0 0.0
    %1272 = vmatprep.subr.mxu0 0.0
    %1273 = vmatpush1.msra.mxu0 0.0
    %1274 = vmatprep.subr.mxu0 0.0
    %1275 = vmatpush1.msra.mxu0 0.0
    %1276 = vmatprep.subr.mxu0 0.0
    %1277 = vmatpush1.msra.mxu0 0.0
    %1278 = vmatprep.subr.mxu0 0.0
    %1279 = vmatpush1.msra.mxu0 0.0
    %1280 = vmatprep.subr.mxu0 0.0
    %1281 = vmatpush1.msra.mxu0 0.0
    %1282 = vmatprep.subr.mxu0 0.0
    %1283 = vmatpush1.msra.mxu0 0.0
    %1284 = vmatprep.subr.mxu0 0.0
    %1285 = vmatpush1.msra.mxu0 0.0
    %1286 = vmatprep.subr.mxu0 0.0
    %1287 = vmatpush1.msra.mxu0 0.0
    %1288 = vmatprep.subr.mxu0 0.0
    %1289 = vmatpush1.msra.mxu0 0.0
    %1290 = vmatprep.subr.mxu0 0.0
    %1291 = vmatpush1.msra.mxu0 0.0
    %1292 = vmatprep.subr.mxu0 0.0
    %1293 = vmatpush1.msra.mxu0 0.0
    %1294 = vmatprep.subr.mxu0 0.0
    %1295 = vmatpush1.msra.mxu0 0.0
    %1296 = vmatprep.subr.mxu0 0.0
    %1297 = vmatpush1.msra.mxu0 0.0
    %1298 = vmatprep.mubr.f32.mxu0 0.0
    %1299 = vmatmul.mubr.f32.gmra.mrb[0].mxu0 %v1149
    %v1300 = vpop.f32.mrb[0].mxu0
    %v1301 = vadd.f32 %v1146, %v1300
    %v1302 = vpop.f32.mrb[0].mxu0
    %v1303 = vadd.f32 %v1146, %v1302
    %1304 = vdwg.mxu0
    %s1305 = sld [smem:[#allocation2 + $0x80]]
    %vm1306 = vcmp.ge.f32.partialorder %v1230, 0.0
    %vm1307 = vcmp.ge.f32.partialorder %v1232, 0.0
    %vm1308 = vcmp.ge.f32.partialorder %v1301, 0.0
    %vm1309 = vcmp.ge.f32.partialorder %v1303, 0.0
    %v1310 = vstv %s1305
    %v1311 = vmul.f32 %v1310, %v1230
    %v1312 = vmul.f32 %v1310, %v1232
    %v1313 = vmul.f32 %v1310, %v1301
    %v1314 = vmul.f32 %v1310, %v1303
    %v1315 = vsel %vm1306, %v1230, %v1311
    %v1316 = vsel %vm1307, %v1232, %v1312
    %v1317 = vsel %vm1308, %v1301, %v1313
    %v1318 = vsel %vm1309, %v1303, %v1314
    %1319 = vrot.lane.b32.xlu0 %v1315, 17
    %v1320 = vpop.permute.xlu0 %1319
    %1321 = vrot.lane.b32.xlu0 %v1316, 17
    %v1322 = vpop.permute.xlu0 %1321
    %1323 = vrot.lane.b32.xlu0 %v1317, 17
    %v1324 = vpop.permute.xlu0 %1323
    %1325 = vrot.lane.b32.xlu0 %v1318, 17
    %v1326 = vpop.permute.xlu0 %1325
    %v1327 = vsel %vm67, %v1324, %v1326
    %v1328 = vsel %vm67, %v1322, %v1324
    %v1329 = vsel %vm67, %v1320, %v1322
    %v1330 = vsel %vm67, %v1326, %v1320
    %v1331 = vmul.f32 %v1330, %v75
    %v1332 = vmul.f32 %v1329, %v79
    %v1333 = vmul.f32 %v1328, %v83
    %v1334 = vmul.f32 %v1327, %v87
    %1335 = vrot.lane.b32.xlu0 %v1315, 16
    %v1336 = vpop.permute.xlu0 %1335
    %1337 = vrot.lane.b32.xlu0 %v1316, 16
    %v1338 = vpop.permute.xlu0 %1337
    %1339 = vrot.lane.b32.xlu0 %v1317, 16
    %v1340 = vpop.permute.xlu0 %1339
    %1341 = vrot.lane.b32.xlu0 %v1318, 16
    %v1342 = vpop.permute.xlu0 %1341
    %v1343 = vsel %vm100, %v1340, %v1342
    %v1344 = vsel %vm100, %v1338, %v1340
    %v1345 = vsel %vm100, %v1336, %v1338
    %v1346 = vsel %vm100, %v1342, %v1336
    %v1347 = vmul.f32 %v1346, %v108
    %v1348 = vmul.f32 %v1345, %v112
    %v1349 = vmul.f32 %v1344, %v116
    %v1350 = vmul.f32 %v1343, %v120
    %1351 = vrot.lane.b32.xlu0 %v1315, 15
    %v1352 = vpop.permute.xlu0 %1351
    %1353 = vrot.lane.b32.xlu0 %v1316, 15
    %v1354 = vpop.permute.xlu0 %1353
    %1355 = vrot.lane.b32.xlu0 %v1317, 15
    %v1356 = vpop.permute.xlu0 %1355
    %1357 = vrot.lane.b32.xlu0 %v1318, 15
    %v1358 = vpop.permute.xlu0 %1357
    %v1359 = vsel %vm133, %v1356, %v1358
    %v1360 = vsel %vm133, %v1354, %v1356
    %v1361 = vsel %vm133, %v1352, %v1354
    %v1362 = vsel %vm133, %v1358, %v1352
    %v1363 = vmul.f32 %v1362, %v141
    %v1364 = vmul.f32 %v1361, %v145
    %v1365 = vmul.f32 %v1360, %v149
    %v1366 = vmul.f32 %v1359, %v153
    %1367 = vrot.lane.b32.xlu0 %v1315, 1
    %v1368 = vpop.permute.xlu0 %1367
    %1369 = vrot.lane.b32.xlu0 %v1316, 1
    %v1370 = vpop.permute.xlu0 %1369
    %1371 = vrot.lane.b32.xlu0 %v1317, 1
    %v1372 = vpop.permute.xlu0 %1371
    %1373 = vrot.lane.b32.xlu0 %v1318, 1
    %v1374 = vpop.permute.xlu0 %1373
    %v1375 = vsel %vm166, %v1372, %v1374
    %v1376 = vsel %vm166, %v1370, %v1372
    %v1377 = vsel %vm166, %v1368, %v1370
    %v1378 = vsel %vm166, %v1374, %v1368
    %v1379 = vmul.f32 %v1378, %v174
    %v1380 = vmul.f32 %v1377, %v178
    %v1381 = vmul.f32 %v1376, %v182
    %v1382 = vmul.f32 %v1375, %v186
    %1383 = vrot.lane.b32.xlu0 %v1315, 127
    %v1384 = vpop.permute.xlu0 %1383
    %1385 = vrot.lane.b32.xlu0 %v1316, 127
    %v1386 = vpop.permute.xlu0 %1385
    %1387 = vrot.lane.b32.xlu0 %v1317, 127
    %v1388 = vpop.permute.xlu0 %1387
    %1389 = vrot.lane.b32.xlu0 %v1318, 127
    %v1390 = vpop.permute.xlu0 %1389
    %v1391 = vsel %vm199, %v1388, %v1390
    %v1392 = vsel %vm199, %v1386, %v1388
    %v1393 = vsel %vm199, %v1384, %v1386
    %v1394 = vsel %vm199, %v1390, %v1384
    %v1395 = vmul.f32 %v1393, %v207
    %v1396 = vmul.f32 %v1392, %v211
    %v1397 = vmul.f32 %v1391, %v215
    %v1398 = vmul.f32 %v1394, %v219
    %1399 = vrot.lane.b32.xlu0 %v1315, 113
    %v1400 = vpop.permute.xlu0 %1399
    %1401 = vrot.lane.b32.xlu0 %v1316, 113
    %v1402 = vpop.permute.xlu0 %1401
    %1403 = vrot.lane.b32.xlu0 %v1317, 113
    %v1404 = vpop.permute.xlu0 %1403
    %1405 = vrot.lane.b32.xlu0 %v1318, 113
    %v1406 = vpop.permute.xlu0 %1405
    %v1407 = vsel %vm232, %v1404, %v1406
    %v1408 = vsel %vm232, %v1402, %v1404
    %v1409 = vsel %vm232, %v1400, %v1402
    %v1410 = vsel %vm232, %v1406, %v1400
    %v1411 = vmul.f32 %v1409, %v240
    %v1412 = vmul.f32 %v1408, %v244
    %v1413 = vmul.f32 %v1407, %v248
    %v1414 = vmul.f32 %v1410, %v252
    %1415 = vrot.lane.b32.xlu0 %v1315, 112
    %v1416 = vpop.permute.xlu0 %1415
    %1417 = vrot.lane.b32.xlu0 %v1316, 112
    %v1418 = vpop.permute.xlu0 %1417
    %1419 = vrot.lane.b32.xlu0 %v1317, 112
    %v1420 = vpop.permute.xlu0 %1419
    %1421 = vrot.lane.b32.xlu0 %v1318, 112
    %v1422 = vpop.permute.xlu0 %1421
    %v1423 = vsel %vm265, %v1420, %v1422
    %v1424 = vsel %vm265, %v1418, %v1420
    %v1425 = vsel %vm265, %v1416, %v1418
    %v1426 = vsel %vm265, %v1422, %v1416
    %v1427 = vmul.f32 %v1425, %v273
    %v1428 = vmul.f32 %v1424, %v277
    %v1429 = vmul.f32 %v1423, %v281
    %v1430 = vmul.f32 %v1426, %v285
    %1431 = vrot.lane.b32.xlu0 %v1315, 111
    %v1432 = vpop.permute.xlu0 %1431
    %1433 = vrot.lane.b32.xlu0 %v1316, 111
    %v1434 = vpop.permute.xlu0 %1433
    %1435 = vrot.lane.b32.xlu0 %v1317, 111
    %v1436 = vpop.permute.xlu0 %1435
    %1437 = vrot.lane.b32.xlu0 %v1318, 111
    %v1438 = vpop.permute.xlu0 %1437
    %v1439 = vsel %vm298, %v1436, %v1438
    %v1440 = vsel %vm298, %v1434, %v1436
    %v1441 = vsel %vm298, %v1432, %v1434
    %v1442 = vsel %vm298, %v1438, %v1432
    %v1443 = vmul.f32 %v1441, %v306
    %v1444 = vmul.f32 %v1440, %v310
    %v1445 = vmul.f32 %v1439, %v314
    %v1446 = vmul.f32 %v1442, %v318
    %v1451 = vrot.slane %v1347, 4
    %v1452 = vrot.slane %v1348, 4
    %v1453 = vrot.slane %v1349, 4
    %v1454 = vrot.slane %v1350, 4
    %v1463 = vrot.slane %v1379, 4
    %v1464 = vrot.slane %v1380, 4
    %v1465 = vrot.slane %v1381, 4
    %v1466 = vrot.slane %v1382, 4
    %v1475 = vrot.slane %v1395, 4
    %v1476 = vrot.slane %v1396, 4
    %v1477 = vrot.slane %v1397, 4
    %v1478 = vrot.slane %v1398, 4
    %v1487 = vrot.slane %v1427, 4
    %v1488 = vrot.slane %v1428, 4
    %v1489 = vrot.slane %v1429, 4
    %v1490 = vrot.slane %v1430, 4
    %v1495 = vsel %vm371, %v1331, %v1451
    %v1496 = vsel %vm371, %v1332, %v1452
    %v1497 = vsel %vm371, %v1333, %v1453
    %v1498 = vsel %vm371, %v1334, %v1454
    %v1499 = vsel %vm371, %v1363, %v1463
    %v1500 = vsel %vm371, %v1364, %v1464
    %v1501 = vsel %vm371, %v1365, %v1465
    %v1502 = vsel %vm371, %v1366, %v1466
    %v1503 = vsel %vm371, %v1315, %v1475
    %v1504 = vsel %vm371, %v1316, %v1476
    %v1505 = vsel %vm371, %v1317, %v1477
    %v1506 = vsel %vm371, %v1318, %v1478
    %v1507 = vsel %vm371, %v1411, %v1487
    %v1508 = vsel %vm371, %v1412, %v1488
    %v1509 = vsel %vm371, %v1413, %v1489
    %v1510 = vsel %vm371, %v1414, %v1490
    %1512 = vset.pattern.permute.xlu0 0
    %1513 = vperm.xlu0 %1512, %v48
    %v1514 = vpop.permute.xlu0 %1513
    %v1517 = vsel %vm393, %v44, 0
    %v1520 = vsel %vm371, %v1443, 0
    %v1523 = vsel %vm371, %v1444, 0
    %v1526 = vsel %vm371, %v1445, 0
    %v1529 = vsel %vm371, %v1446, 0
    %1531 = vmatprep.subr.mxu0 %v1496
    %1532 = vmatpush1.msra.mxu0 %v1495
    %1533 = vmatprep.subr.mxu0 %v1500
    %1534 = vmatpush1.msra.mxu0 %v1499
    %1535 = vmatprep.subr.mxu0 %v1504
    %1536 = vmatpush1.msra.mxu0 %v1503
    %1537 = vmatprep.subr.mxu0 %v1508
    %1538 = vmatpush1.msra.mxu0 %v1507
    %1539 = vmatprep.subr.mxu0 %v1523
    %1540 = vmatpush1.msra.mxu0 %v1520
    %1541 = vmatprep.subr.mxu0 0.0
    %1542 = vmatpush1.msra.mxu0 0.0
    %1543 = vmatprep.subr.mxu0 0.0
    %1544 = vmatpush1.msra.mxu0 0.0
    %1545 = vmatprep.subr.mxu0 0.0
    %1546 = vmatpush1.msra.mxu0 0.0
    %1547 = vmatprep.subr.mxu0 0.0
    %1548 = vmatpush1.msra.mxu0 0.0
    %1549 = vmatprep.subr.mxu0 0.0
    %1550 = vmatpush1.msra.mxu0 0.0
    %1551 = vmatprep.subr.mxu0 0.0
    %1552 = vmatpush1.msra.mxu0 0.0
    %1553 = vmatprep.subr.mxu0 0.0
    %1554 = vmatpush1.msra.mxu0 0.0
    %1555 = vmatprep.subr.mxu0 0.0
    %1556 = vmatpush1.msra.mxu0 0.0
    %1557 = vmatprep.subr.mxu0 0.0
    %1558 = vmatpush1.msra.mxu0 0.0
    %1559 = vmatprep.subr.mxu0 0.0
    %1560 = vmatpush1.msra.mxu0 0.0
    %1561 = vmatprep.subr.mxu0 0.0
    %1562 = vmatpush1.msra.mxu0 0.0
    %1563 = vmatprep.subr.mxu0 0.0
    %1564 = vmatpush1.msra.mxu0 0.0
    %1565 = vmatprep.subr.mxu0 0.0
    %1566 = vmatpush1.msra.mxu0 0.0
    %1567 = vmatprep.subr.mxu0 0.0
    %1568 = vmatpush1.msra.mxu0 0.0
    %1569 = vmatprep.subr.mxu0 0.0
    %1570 = vmatpush1.msra.mxu0 0.0
    %1571 = vmatprep.subr.mxu0 0.0
    %1572 = vmatpush1.msra.mxu0 0.0
    %1573 = vmatprep.subr.mxu0 0.0
    %1574 = vmatpush1.msra.mxu0 0.0
    %1575 = vmatprep.subr.mxu0 0.0
    %1576 = vmatpush1.msra.mxu0 0.0
    %1577 = vmatprep.subr.mxu0 0.0
    %1578 = vmatpush1.msra.mxu0 0.0
    %1579 = vmatprep.subr.mxu0 0.0
    %1580 = vmatpush1.msra.mxu0 0.0
    %1581 = vmatprep.subr.mxu0 0.0
    %1582 = vmatpush1.msra.mxu0 0.0
    %1583 = vmatprep.subr.mxu0 0.0
    %1584 = vmatpush1.msra.mxu0 0.0
    %1585 = vmatprep.subr.mxu0 0.0
    %1586 = vmatpush1.msra.mxu0 0.0
    %1587 = vmatprep.subr.mxu0 0.0
    %1588 = vmatpush1.msra.mxu0 0.0
    %1589 = vmatprep.subr.mxu0 0.0
    %1590 = vmatpush1.msra.mxu0 0.0
    %1591 = vmatprep.subr.mxu0 0.0
    %1592 = vmatpush1.msra.mxu0 0.0
    %1593 = vmatprep.subr.mxu0 0.0
    %1594 = vmatpush1.msra.mxu0 0.0
    %1595 = vmatprep.mubr.f32.mxu0 0.0
    %1596 = vmatmul.mubr.f32.gmra.mrb[0].mxu0 %v1517
    %v1597 = vpop.f32.mrb[0].mxu0
    %v1598 = vadd.f32 %v1514, %v1597
    %v1599 = vpop.f32.mrb[0].mxu0
    %v1600 = vadd.f32 %v1514, %v1599
    %1601 = vdwg.mxu0
    %1602 = vmatprep.subr.mxu0 %v1498
    %1603 = vmatpush1.msra.mxu0 %v1497
    %1604 = vmatprep.subr.mxu0 %v1502
    %1605 = vmatpush1.msra.mxu0 %v1501
    %1606 = vmatprep.subr.mxu0 %v1506
    %1607 = vmatpush1.msra.mxu0 %v1505
    %1608 = vmatprep.subr.mxu0 %v1510
    %1609 = vmatpush1.msra.mxu0 %v1509
    %1610 = vmatprep.subr.mxu0 %v1529
    %1611 = vmatpush1.msra.mxu0 %v1526
    %1612 = vmatprep.subr.mxu0 0.0
    %1613 = vmatpush1.msra.mxu0 0.0
    %1614 = vmatprep.subr.mxu0 0.0
    %1615 = vmatpush1.msra.mxu0 0.0
    %1616 = vmatprep.subr.mxu0 0.0
    %1617 = vmatpush1.msra.mxu0 0.0
    %1618 = vmatprep.subr.mxu0 0.0
    %1619 = vmatpush1.msra.mxu0 0.0
    %1620 = vmatprep.subr.mxu0 0.0
    %1621 = vmatpush1.msra.mxu0 0.0
    %1622 = vmatprep.subr.mxu0 0.0
    %1623 = vmatpush1.msra.mxu0 0.0
    %1624 = vmatprep.subr.mxu0 0.0
    %1625 = vmatpush1.msra.mxu0 0.0
    %1626 = vmatprep.subr.mxu0 0.0
    %1627 = vmatpush1.msra.mxu0 0.0
    %1628 = vmatprep.subr.mxu0 0.0
    %1629 = vmatpush1.msra.mxu0 0.0
    %1630 = vmatprep.subr.mxu0 0.0
    %1631 = vmatpush1.msra.mxu0 0.0
    %1632 = vmatprep.subr.mxu0 0.0
    %1633 = vmatpush1.msra.mxu0 0.0
    %1634 = vmatprep.subr.mxu0 0.0
    %1635 = vmatpush1.msra.mxu0 0.0
    %1636 = vmatprep.subr.mxu0 0.0
    %1637 = vmatpush1.msra.mxu0 0.0
    %1638 = vmatprep.subr.mxu0 0.0
    %1639 = vmatpush1.msra.mxu0 0.0
    %1640 = vmatprep.subr.mxu0 0.0
    %1641 = vmatpush1.msra.mxu0 0.0
    %1642 = vmatprep.subr.mxu0 0.0
    %1643 = vmatpush1.msra.mxu0 0.0
    %1644 = vmatprep.subr.mxu0 0.0
    %1645 = vmatpush1.msra.mxu0 0.0
    %1646 = vmatprep.subr.mxu0 0.0
    %1647 = vmatpush1.msra.mxu0 0.0
    %1648 = vmatprep.subr.mxu0 0.0
    %1649 = vmatpush1.msra.mxu0 0.0
    %1650 = vmatprep.subr.mxu0 0.0
    %1651 = vmatpush1.msra.mxu0 0.0
    %1652 = vmatprep.subr.mxu0 0.0
    %1653 = vmatpush1.msra.mxu0 0.0
    %1654 = vmatprep.subr.mxu0 0.0
    %1655 = vmatpush1.msra.mxu0 0.0
    %1656 = vmatprep.subr.mxu0 0.0
    %1657 = vmatpush1.msra.mxu0 0.0
    %1658 = vmatprep.subr.mxu0 0.0
    %1659 = vmatpush1.msra.mxu0 0.0
    %1660 = vmatprep.subr.mxu0 0.0
    %1661 = vmatpush1.msra.mxu0 0.0
    %1662 = vmatprep.subr.mxu0 0.0
    %1663 = vmatpush1.msra.mxu0 0.0
    %1664 = vmatprep.subr.mxu0 0.0
    %1665 = vmatpush1.msra.mxu0 0.0
    %1666 = vmatprep.mubr.f32.mxu0 0.0
    %1667 = vmatmul.mubr.f32.gmra.mrb[0].mxu0 %v1517
    %v1668 = vpop.f32.mrb[0].mxu0
    %v1669 = vadd.f32 %v1514, %v1668
    %v1670 = vpop.f32.mrb[0].mxu0
    %v1671 = vadd.f32 %v1514, %v1670
    %1672 = vdwg.mxu0
    %s1673 = sld [smem:[#allocation2 + $0x81]]
    %vm1674 = vcmp.ge.f32.partialorder %v1598, 0.0
    %vm1675 = vcmp.ge.f32.partialorder %v1600, 0.0
    %vm1676 = vcmp.ge.f32.partialorder %v1669, 0.0
    %vm1677 = vcmp.ge.f32.partialorder %v1671, 0.0
    %v1678 = vstv %s1673
    %v1679 = vmul.f32 %v1678, %v1598
    %v1680 = vmul.f32 %v1678, %v1600
    %v1681 = vmul.f32 %v1678, %v1669
    %v1682 = vmul.f32 %v1678, %v1671
    %v1683 = vsel %vm1674, %v1598, %v1679
    %v1684 = vsel %vm1675, %v1600, %v1680
    %v1685 = vsel %vm1676, %v1669, %v1681
    %v1686 = vsel %vm1677, %v1671, %v1682
    %s1687 = sld [smem:[#allocation2 + $0x82]]
    %vm1688 = vcmp.ge.f32.partialorder %v1683, 0.0
    %vm1689 = vcmp.ge.f32.partialorder %v1684, 0.0
    %vm1690 = vcmp.ge.f32.partialorder %v1685, 0.0
    %vm1691 = vcmp.ge.f32.partialorder %v1686, 0.0
    %v1692 = vstv %s1687
    %v1693 = vmul.f32 %v1692, %v1683
    %v1694 = vmul.f32 %v1692, %v1684
    %v1695 = vmul.f32 %v1692, %v1685
    %v1696 = vmul.f32 %v1692, %v1686
    %v1697 = vsel %vm1688, %v1683, %v1693
    %v1698 = vsel %vm1689, %v1684, %v1694
    %v1699 = vsel %vm1690, %v1685, %v1695
    %v1700 = vsel %vm1691, %v1686, %v1696
    %v1701 = vadd.f32 %v1697, %v947
    %v1702 = vadd.f32 %v1698, %v948
    %v1703 = vadd.f32 %v1699, %v949
    %v1704 = vadd.f32 %v1700, %v950
    %v1707 = vcombine.low %v1701, %v1702
    %1709 = vst [vmem:[%s5] sm:$0xff] %v1707
    %v1712 = vcombine.low %v1703, %v1704
    %s1714 = scalar_lea.vmem %s5, 8
    %1715 = vst [vmem:[%s1714] sm:$0xff] %v1712
    // Predicated region
    $region26: #{resblock_forward.1} parent=1 // pred_check
      _
    $region27: #{resblock_forward.1} parent=1 // pred_check_branch
      %1717 = sbr.rel (0) target = $region29
    $region28: #{resblock_forward.1} parent=1 // pred_region
      _
    $region29: #{resblock_forward.1} parent=1 // pred_fallthru
      _
    // Predicated region
    $region30: #{resblock_forward.1} parent=1 // pred_check
      _
    $region31: #{resblock_forward.1} parent=1 // pred_check_branch
      %1719 = sbr.rel (0) target = $region33
    $region32: #{resblock_forward.1} parent=1 // pred_region
      _
    $region33: #{resblock_forward.1} parent=1 // pred_fallthru
      _
    %1720 = vsyncpa [#allocation3], 1

</llo_original>
